<compile_context>
chip_gen: v6e
topology: v6e:2x2x1
jax: 0.10.0
libtpu: 0.0.40
codegen_flags: <defaults>
</compile_context>

<pallas_src>
import jax
import jax.numpy as jnp
from jax.experimental import pallas as pl
from jax.experimental.pallas import tpu as pltpu

# ---------------- configuration (small synthetic shapes) ----------------
B = 2                       # batch
C_IN = 4                    # image channels
H_IMG = 16                  # image height
W_IMG = 16                  # image width
HW = H_IMG * W_IMG          # flattened spatial size (lane-dense: 256 = 2*128)
LEN_TABULAR_FEATURES = 12   # number of tabular features
HIDDEN = 32                 # TabularModel hidden_size
IMG_FEATURES = 32           # stand-in for img_layer.num_features
OUT_DIM = 1                 # PetFinderModel out_dim
NUM_UNITS = 4               # TabularModel num_unit
LAYERS_PER_UNIT = 3         # LinearReluLayer layer_num
BN_EPS = 1e-5               # nn.BatchNorm1d default eps


# ---------------- single fused kernel ----------------
def _petfinder_kernel(img_ref, wimg_t_ref, tab_ref, wstart_ref,
                      scale_ref, shift_ref, linw_ref,
                      whead_img_ref, whead_tab_ref, bhead_ref,
                      out_ref, imgfeat_ref):
    f32 = jnp.float32

    # ---------- image branch (synthetic backbone: 1x1 conv + ReLU + global avg pool) ----------
    # TODO(synk): timm create_model(backbone, num_classes=0) has no Pallas equivalent; this
    # synthetic extractor honours the same output contract: (B, num_features).
    wimg_t = wimg_t_ref[...]                               # (F, C_IN)
    pool = jnp.full((1, HW), 1.0 / HW, f32)                # mean pool expressed as a K=HW contraction
    for b in range(B):                                     # B=2, static unroll
        xb = img_ref[b]                                    # (C_IN, HW): HW on lanes (lane-dense)
        # C_IN=4 channel contraction as VPU broadcast-FMAs (keeps the MXU out of a K=4 matmul).
        h = wimg_t[:, 0:1] * xb[0:1, :]                    # (F, HW)
        for c in range(1, C_IN):
            h = h + wimg_t[:, c:c + 1] * xb[c:c + 1, :]
        h = jnp.maximum(h, 0.0)                            # ReLU before pooling
        # Global average pool folded into a single (1,HW)·(F,HW)^T contraction -> (1, F).
        # This lands the img_feat row lane-major, so no transpose is needed.
        row = jnp.einsum("os,fs->of", pool, h, preferred_element_type=f32)
        imgfeat_ref[b:b + 1, :] = row
    img_feat = imgfeat_ref[...]                            # (B, F)

    # ---------- tabular branch (start linear + NUM_UNITS residual LinearReluLayer units) ----------
    x = jnp.dot(tab_ref[...], wstart_ref[...], preferred_element_type=f32)   # (B, HIDDEN)
    skip = x
    for u in range(NUM_UNITS):
        h = x
        for i in range(LAYERS_PER_UNIT):
            idx = u * LAYERS_PER_UNIT + i
            # BatchNorm1d (eval mode) pre-folded into scale/shift in the wrapper.
            # nn.Dropout before the last Linear of each unit is identity in eval mode.
            h = h * scale_ref[idx] + shift_ref[idx]
            h = jnp.maximum(h, 0.0)                        # ReLU
            h = jnp.dot(h, linw_ref[idx], preferred_element_type=f32)
        x = h + skip                                       # residual skip
        skip = x

    # ---------- head: Dropout(id) + Linear(IMG_FEATURES + HIDDEN -> OUT_DIM, bias) ----------
    # torch.cat([img, tab], dim=1) @ w_head == img @ w_head[:F] + tab @ w_head[F:]
    out = (jnp.sum(img_feat * whead_img_ref[...], axis=1, keepdims=True)
           + jnp.sum(x * whead_tab_ref[...], axis=1, keepdims=True)
           + bhead_ref[...])
    out_ref[...] = out


# ---------------- wrapper: one fused launch ----------------
def petfinder_forward(img, tab, p):
    b, c, hh, ww = img.shape
    img_r = img.reshape(b, c, hh * ww)                      # free reshape, NO transpose
    # Parameter prep (tiny, trace-time): transpose the 1x1-conv weight, fold BN, split head.
    wimg_t = p["w_img"].T                                   # (F, C_IN)
    scale = p["bn_gamma"] * jax.lax.rsqrt(p["bn_var"] + BN_EPS)
    shift = p["bn_beta"] - p["bn_mean"] * scale
    whead_img = p["w_head"][:IMG_FEATURES, :].T             # (1, F)
    whead_tab = p["w_head"][IMG_FEATURES:, :].T             # (1, HIDDEN)

    vmem = pl.BlockSpec(memory_space=pltpu.MemorySpace.VMEM)
    out, img_feat = pl.pallas_call(
        _petfinder_kernel,
        out_shape=(jax.ShapeDtypeStruct((b, OUT_DIM), jnp.float32),
                   jax.ShapeDtypeStruct((b, IMG_FEATURES), jnp.float32)),
        in_specs=[vmem] * 10,
        out_specs=(vmem, vmem),
    )(img_r, wimg_t, tab, p["w_start"], scale, shift, p["lin_w"],
      whead_img, whead_tab, p["b_head"])
    return out, img_feat


# ---------------- pure-JAX reference for correctness check ----------------
def reference_forward(img, tab, p):
    b, c, h, w = img.shape
    x = img.reshape(b, c, h * w).transpose(0, 2, 1)
    img_feat = jnp.maximum(jnp.einsum("bsc,cf->bsf", x, p["w_img"]), 0.0).mean(axis=1)
    t = tab @ p["w_start"]
    skip = t
    for u in range(NUM_UNITS):
        hh = t
        for i in range(LAYERS_PER_UNIT):
            idx = u * LAYERS_PER_UNIT + i
            hh = (hh - p["bn_mean"][idx]) * jax.lax.rsqrt(p["bn_var"][idx] + BN_EPS) \
                 * p["bn_gamma"][idx] + p["bn_beta"][idx]
            hh = jnp.maximum(hh, 0.0)
            hh = hh @ p["lin_w"][idx]
        t = hh + skip
        skip = t
    xcat = jnp.concatenate([img_feat, t], axis=1)
    return xcat @ p["w_head"] + p["b_head"], img_feat


# ---------------- deterministic parameter init ----------------
def init_params(key):
    ks = jax.random.split(key, 8)
    n = NUM_UNITS * LAYERS_PER_UNIT
    return {
        "w_img": jax.random.normal(ks[0], (C_IN, IMG_FEATURES), jnp.float32) * 0.1,
        "w_start": jax.random.normal(ks[1], (LEN_TABULAR_FEATURES, HIDDEN), jnp.float32) * 0.1,
        "bn_gamma": jax.random.uniform(ks[2], (n, HIDDEN), jnp.float32, 0.8, 1.2),
        "bn_beta": jax.random.normal(ks[3], (n, HIDDEN), jnp.float32) * 0.05,
        "bn_mean": jax.random.normal(ks[4], (n, HIDDEN), jnp.float32) * 0.05,
        "bn_var": jax.random.uniform(ks[5], (n, HIDDEN), jnp.float32, 0.5, 1.5),
        "lin_w": jax.random.normal(ks[6], (n, HIDDEN, HIDDEN), jnp.float32)
                 * (1.0 / (HIDDEN ** 0.5)),
        "w_head": jax.random.normal(ks[7], (IMG_FEATURES + HIDDEN, OUT_DIM), jnp.float32) * 0.1,
        "b_head": jnp.zeros((1, OUT_DIM), jnp.float32),
    }


if __name__ == "__main__":
    key = jax.random.PRNGKey(0)
    k_img, k_tab, k_par = jax.random.split(key, 3)
    img = jax.random.normal(k_img, (B, C_IN, H_IMG, W_IMG), jnp.float32)   # NCHW
    tab = jax.random.normal(k_tab, (B, LEN_TABULAR_FEATURES), jnp.float32)
    params = init_params(k_par)

    out, img_feat = jax.jit(petfinder_forward)(img, tab, params)
    jax.block_until_ready(out)
    jax.block_until_ready(img_feat)

    ref_out, ref_img = reference_forward(img, tab, params)
    assert out.shape == (B, OUT_DIM) and img_feat.shape == (B, IMG_FEATURES)
    assert jnp.allclose(out, ref_out, atol=1e-3, rtol=1e-3)
    assert jnp.allclose(img_feat, ref_img, atol=1e-3, rtol=1e-3)
    print("KERNEL_OK")
</pallas_src>

<mosaic_0001>
module attributes {stable_mosaic.version = 11 : i64} {
  func.func @_petfinder_kernel(%arg0: memref<2x4x256xf32, #tpu.memory_space<vmem>>, %arg1: memref<32x4xf32, #tpu.memory_space<vmem>>, %arg2: memref<2x12xf32, #tpu.memory_space<vmem>>, %arg3: memref<12x32xf32, #tpu.memory_space<vmem>>, %arg4: memref<12x32xf32, #tpu.memory_space<vmem>>, %arg5: memref<12x32xf32, #tpu.memory_space<vmem>>, %arg6: memref<12x32x32xf32, #tpu.memory_space<vmem>>, %arg7: memref<1x32xf32, #tpu.memory_space<vmem>>, %arg8: memref<1x32xf32, #tpu.memory_space<vmem>>, %arg9: memref<1x1xf32, #tpu.memory_space<vmem>>, %arg10: memref<2x1xf32, #tpu.memory_space<vmem>>, %arg11: memref<2x32xf32, #tpu.memory_space<vmem>>) attributes {dimension_semantics = [], scalar_prefetch = 0 : i64, scratch_operands = 0 : i64, tpu.core_type = #tpu.core_type<tc>} {
    %c0 = arith.constant 0 : index
    %c0_0 = arith.constant 0 : index
    %0 = vector.load %arg1[%c0, %c0_0] : memref<32x4xf32, #tpu.memory_space<vmem>>, vector<32x4xf32>
    %cst = arith.constant 3.906250e-03 : f32
    %1 = vector.broadcast %cst : f32 to vector<1x256xf32>
    %c0_1 = arith.constant 0 : index
    %c0_2 = arith.constant 0 : index
    %c0_3 = arith.constant 0 : index
    %2 = vector.load %arg0[%c0_1, %c0_2, %c0_3] : memref<2x4x256xf32, #tpu.memory_space<vmem>>, vector<1x4x256xf32>
    %3 = vector.shape_cast %2 : vector<1x4x256xf32> to vector<4x256xf32>
    %4 = vector.extract_strided_slice %0 {offsets = [0, 0], sizes = [32, 1], strides = [1, 1]} : vector<32x4xf32> to vector<32x1xf32>
    %5 = vector.extract_strided_slice %3 {offsets = [0, 0], sizes = [1, 256], strides = [1, 1]} : vector<4x256xf32> to vector<1x256xf32>
    %6 = vector.broadcast %4 : vector<32x1xf32> to vector<32x256xf32>
    %7 = vector.broadcast %5 : vector<1x256xf32> to vector<32x256xf32>
    %8 = arith.mulf %6, %7 : vector<32x256xf32>
    %9 = vector.extract_strided_slice %0 {offsets = [0, 1], sizes = [32, 1], strides = [1, 1]} : vector<32x4xf32> to vector<32x1xf32>
    %10 = vector.extract_strided_slice %3 {offsets = [1, 0], sizes = [1, 256], strides = [1, 1]} : vector<4x256xf32> to vector<1x256xf32>
    %11 = vector.broadcast %9 : vector<32x1xf32> to vector<32x256xf32>
    %12 = vector.broadcast %10 : vector<1x256xf32> to vector<32x256xf32>
    %13 = arith.mulf %11, %12 : vector<32x256xf32>
    %14 = arith.addf %8, %13 : vector<32x256xf32>
    %15 = vector.extract_strided_slice %0 {offsets = [0, 2], sizes = [32, 1], strides = [1, 1]} : vector<32x4xf32> to vector<32x1xf32>
    %16 = vector.extract_strided_slice %3 {offsets = [2, 0], sizes = [1, 256], strides = [1, 1]} : vector<4x256xf32> to vector<1x256xf32>
    %17 = vector.broadcast %15 : vector<32x1xf32> to vector<32x256xf32>
    %18 = vector.broadcast %16 : vector<1x256xf32> to vector<32x256xf32>
    %19 = arith.mulf %17, %18 : vector<32x256xf32>
    %20 = arith.addf %14, %19 : vector<32x256xf32>
    %21 = vector.extract_strided_slice %0 {offsets = [0, 3], sizes = [32, 1], strides = [1, 1]} : vector<32x4xf32> to vector<32x1xf32>
    %22 = vector.extract_strided_slice %3 {offsets = [3, 0], sizes = [1, 256], strides = [1, 1]} : vector<4x256xf32> to vector<1x256xf32>
    %23 = vector.broadcast %21 : vector<32x1xf32> to vector<32x256xf32>
    %24 = vector.broadcast %22 : vector<1x256xf32> to vector<32x256xf32>
    %25 = arith.mulf %23, %24 : vector<32x256xf32>
    %26 = arith.addf %20, %25 : vector<32x256xf32>
    %cst_4 = arith.constant 0.000000e+00 : f32
    %27 = vector.broadcast %cst_4 : f32 to vector<32x256xf32>
    %28 = arith.maximumf %26, %27 : vector<32x256xf32>
    "tpu.trace_start"() <{level = 10 : i32, message = "os,fs->of"}> : () -> ()
    %cst_5 = arith.constant dense<0.000000e+00> : vector<1x32xf32>
    %29 = tpu.matmul %1, %28, %cst_5 {dimension_numbers = #tpu.dot_dimension_numbers<[1], [1], [0], [0], [0, 0, 1, 0], [], []>} : vector<1x256xf32>, vector<32x256xf32>, vector<1x32xf32> -> vector<1x32xf32>
    "tpu.trace_stop"() : () -> ()
    %c0_6 = arith.constant 0 : index
    %c0_7 = arith.constant 0 : index
    %30 = vector.load %arg11[%c0_6, %c0_7] : memref<2x32xf32, #tpu.memory_space<vmem>>, vector<1x32xf32>
    tpu.vector_store %arg11[%c0_6, %c0_7], %29 {strides = array<i32>} : memref<2x32xf32, #tpu.memory_space<vmem>>, vector<1x32xf32>,
    %c1 = arith.constant 1 : index
    %c0_8 = arith.constant 0 : index
    %c0_9 = arith.constant 0 : index
    %31 = vector.load %arg0[%c1, %c0_8, %c0_9] : memref<2x4x256xf32, #tpu.memory_space<vmem>>, vector<1x4x256xf32>
    %32 = vector.shape_cast %31 : vector<1x4x256xf32> to vector<4x256xf32>
    %33 = vector.extract_strided_slice %0 {offsets = [0, 0], sizes = [32, 1], strides = [1, 1]} : vector<32x4xf32> to vector<32x1xf32>
    %34 = vector.extract_strided_slice %32 {offsets = [0, 0], sizes = [1, 256], strides = [1, 1]} : vector<4x256xf32> to vector<1x256xf32>
    %35 = vector.broadcast %33 : vector<32x1xf32> to vector<32x256xf32>
    %36 = vector.broadcast %34 : vector<1x256xf32> to vector<32x256xf32>
    %37 = arith.mulf %35, %36 : vector<32x256xf32>
    %38 = vector.extract_strided_slice %0 {offsets = [0, 1], sizes = [32, 1], strides = [1, 1]} : vector<32x4xf32> to vector<32x1xf32>
    %39 = vector.extract_strided_slice %32 {offsets = [1, 0], sizes = [1, 256], strides = [1, 1]} : vector<4x256xf32> to vector<1x256xf32>
    %40 = vector.broadcast %38 : vector<32x1xf32> to vector<32x256xf32>
    %41 = vector.broadcast %39 : vector<1x256xf32> to vector<32x256xf32>
    %42 = arith.mulf %40, %41 : vector<32x256xf32>
    %43 = arith.addf %37, %42 : vector<32x256xf32>
    %44 = vector.extract_strided_slice %0 {offsets = [0, 2], sizes = [32, 1], strides = [1, 1]} : vector<32x4xf32> to vector<32x1xf32>
    %45 = vector.extract_strided_slice %32 {offsets = [2, 0], sizes = [1, 256], strides = [1, 1]} : vector<4x256xf32> to vector<1x256xf32>
    %46 = vector.broadcast %44 : vector<32x1xf32> to vector<32x256xf32>
    %47 = vector.broadcast %45 : vector<1x256xf32> to vector<32x256xf32>
    %48 = arith.mulf %46, %47 : vector<32x256xf32>
    %49 = arith.addf %43, %48 : vector<32x256xf32>
    %50 = vector.extract_strided_slice %0 {offsets = [0, 3], sizes = [32, 1], strides = [1, 1]} : vector<32x4xf32> to vector<32x1xf32>
    %51 = vector.extract_strided_slice %32 {offsets = [3, 0], sizes = [1, 256], strides = [1, 1]} : vector<4x256xf32> to vector<1x256xf32>
    %52 = vector.broadcast %50 : vector<32x1xf32> to vector<32x256xf32>
    %53 = vector.broadcast %51 : vector<1x256xf32> to vector<32x256xf32>
    %54 = arith.mulf %52, %53 : vector<32x256xf32>
    %55 = arith.addf %49, %54 : vector<32x256xf32>
    %cst_10 = arith.constant 0.000000e+00 : f32
    %56 = vector.broadcast %cst_10 : f32 to vector<32x256xf32>
    %57 = arith.maximumf %55, %56 : vector<32x256xf32>
    "tpu.trace_start"() <{level = 10 : i32, message = "os,fs->of"}> : () -> ()
    %cst_11 = arith.constant dense<0.000000e+00> : vector<1x32xf32>
    %58 = tpu.matmul %1, %57, %cst_11 {dimension_numbers = #tpu.dot_dimension_numbers<[1], [1], [0], [0], [0, 0, 1, 0], [], []>} : vector<1x256xf32>, vector<32x256xf32>, vector<1x32xf32> -> vector<1x32xf32>
    "tpu.trace_stop"() : () -> ()
    %c1_12 = arith.constant 1 : index
    %c0_13 = arith.constant 0 : index
    %59 = vector.load %arg11[%c1_12, %c0_13] : memref<2x32xf32, #tpu.memory_space<vmem>>, vector<1x32xf32>
    tpu.vector_store %arg11[%c1_12, %c0_13], %58 {strides = array<i32>} : memref<2x32xf32, #tpu.memory_space<vmem>>, vector<1x32xf32>,
    %c0_14 = arith.constant 0 : index
    %c0_15 = arith.constant 0 : index
    %60 = vector.load %arg11[%c0_14, %c0_15] : memref<2x32xf32, #tpu.memory_space<vmem>>, vector<2x32xf32>
    %c0_16 = arith.constant 0 : index
    %c0_17 = arith.constant 0 : index
    %61 = vector.load %arg2[%c0_16, %c0_17] : memref<2x12xf32, #tpu.memory_space<vmem>>, vector<2x12xf32>
    %c0_18 = arith.constant 0 : index
    %c0_19 = arith.constant 0 : index
    %62 = vector.load %arg3[%c0_18, %c0_19] : memref<12x32xf32, #tpu.memory_space<vmem>>, vector<12x32xf32>
    %cst_20 = arith.constant dense<0.000000e+00> : vector<2x32xf32>
    %63 = tpu.matmul %61, %62, %cst_20 {dimension_numbers = #tpu.dot_dimension_numbers<[1], [0], [0], [1], [0, 0, 1, 1], [], []>} : vector<2x12xf32>, vector<12x32xf32>, vector<2x32xf32> -> vector<2x32xf32>
    %c0_21 = arith.constant 0 : index
    %c0_22 = arith.constant 0 : index
    %64 = vector.load %arg4[%c0_21, %c0_22] : memref<12x32xf32, #tpu.memory_space<vmem>>, vector<1x32xf32>
    %65 = vector.shape_cast %64 : vector<1x32xf32> to vector<32xf32>
    %66 = vector.shape_cast %65 : vector<32xf32> to vector<1x32xf32>
    %67 = vector.broadcast %66 : vector<1x32xf32> to vector<2x32xf32>
    %68 = arith.mulf %63, %67 : vector<2x32xf32>
    %c0_23 = arith.constant 0 : index
    %c0_24 = arith.constant 0 : index
    %69 = vector.load %arg5[%c0_23, %c0_24] : memref<12x32xf32, #tpu.memory_space<vmem>>, vector<1x32xf32>
    %70 = vector.shape_cast %69 : vector<1x32xf32> to vector<32xf32>
    %71 = vector.shape_cast %70 : vector<32xf32> to vector<1x32xf32>
    %72 = vector.broadcast %71 : vector<1x32xf32> to vector<2x32xf32>
    %73 = arith.addf %68, %72 : vector<2x32xf32>
    %cst_25 = arith.constant 0.000000e+00 : f32
    %74 = vector.broadcast %cst_25 : f32 to vector<2x32xf32>
    %75 = arith.maximumf %73, %74 : vector<2x32xf32>
    %c0_26 = arith.constant 0 : index
    %c0_27 = arith.constant 0 : index
    %c0_28 = arith.constant 0 : index
    %76 = vector.load %arg6[%c0_26, %c0_27, %c0_28] : memref<12x32x32xf32, #tpu.memory_space<vmem>>, vector<1x32x32xf32>
    %77 = vector.shape_cast %76 : vector<1x32x32xf32> to vector<32x32xf32>
    %cst_29 = arith.constant dense<0.000000e+00> : vector<2x32xf32>
    %78 = tpu.matmul %75, %77, %cst_29 {dimension_numbers = #tpu.dot_dimension_numbers<[1], [0], [0], [1], [0, 0, 1, 1], [], []>} : vector<2x32xf32>, vector<32x32xf32>, vector<2x32xf32> -> vector<2x32xf32>
    %c1_30 = arith.constant 1 : index
    %c0_31 = arith.constant 0 : index
    %79 = vector.load %arg4[%c1_30, %c0_31] : memref<12x32xf32, #tpu.memory_space<vmem>>, vector<1x32xf32>
    %80 = vector.shape_cast %79 : vector<1x32xf32> to vector<32xf32>
    %81 = vector.shape_cast %80 : vector<32xf32> to vector<1x32xf32>
    %82 = vector.broadcast %81 : vector<1x32xf32> to vector<2x32xf32>
    %83 = arith.mulf %78, %82 : vector<2x32xf32>
    %c1_32 = arith.constant 1 : index
    %c0_33 = arith.constant 0 : index
    %84 = vector.load %arg5[%c1_32, %c0_33] : memref<12x32xf32, #tpu.memory_space<vmem>>, vector<1x32xf32>
    %85 = vector.shape_cast %84 : vector<1x32xf32> to vector<32xf32>
    %86 = vector.shape_cast %85 : vector<32xf32> to vector<1x32xf32>
    %87 = vector.broadcast %86 : vector<1x32xf32> to vector<2x32xf32>
    %88 = arith.addf %83, %87 : vector<2x32xf32>
    %cst_34 = arith.constant 0.000000e+00 : f32
    %89 = vector.broadcast %cst_34 : f32 to vector<2x32xf32>
    %90 = arith.maximumf %88, %89 : vector<2x32xf32>
    %c1_35 = arith.constant 1 : index
    %c0_36 = arith.constant 0 : index
    %c0_37 = arith.constant 0 : index
    %91 = vector.load %arg6[%c1_35, %c0_36, %c0_37] : memref<12x32x32xf32, #tpu.memory_space<vmem>>, vector<1x32x32xf32>
    %92 = vector.shape_cast %91 : vector<1x32x32xf32> to vector<32x32xf32>
    %cst_38 = arith.constant dense<0.000000e+00> : vector<2x32xf32>
    %93 = tpu.matmul %90, %92, %cst_38 {dimension_numbers = #tpu.dot_dimension_numbers<[1], [0], [0], [1], [0, 0, 1, 1], [], []>} : vector<2x32xf32>, vector<32x32xf32>, vector<2x32xf32> -> vector<2x32xf32>
    %c2 = arith.constant 2 : index
    %c0_39 = arith.constant 0 : index
    %94 = vector.load %arg4[%c2, %c0_39] : memref<12x32xf32, #tpu.memory_space<vmem>>, vector<1x32xf32>
    %95 = vector.shape_cast %94 : vector<1x32xf32> to vector<32xf32>
    %96 = vector.shape_cast %95 : vector<32xf32> to vector<1x32xf32>
    %97 = vector.broadcast %96 : vector<1x32xf32> to vector<2x32xf32>
    %98 = arith.mulf %93, %97 : vector<2x32xf32>
    %c2_40 = arith.constant 2 : index
    %c0_41 = arith.constant 0 : index
    %99 = vector.load %arg5[%c2_40, %c0_41] : memref<12x32xf32, #tpu.memory_space<vmem>>, vector<1x32xf32>
    %100 = vector.shape_cast %99 : vector<1x32xf32> to vector<32xf32>
    %101 = vector.shape_cast %100 : vector<32xf32> to vector<1x32xf32>
    %102 = vector.broadcast %101 : vector<1x32xf32> to vector<2x32xf32>
    %103 = arith.addf %98, %102 : vector<2x32xf32>
    %cst_42 = arith.constant 0.000000e+00 : f32
    %104 = vector.broadcast %cst_42 : f32 to vector<2x32xf32>
    %105 = arith.maximumf %103, %104 : vector<2x32xf32>
    %c2_43 = arith.constant 2 : index
    %c0_44 = arith.constant 0 : index
    %c0_45 = arith.constant 0 : index
    %106 = vector.load %arg6[%c2_43, %c0_44, %c0_45] : memref<12x32x32xf32, #tpu.memory_space<vmem>>, vector<1x32x32xf32>
    %107 = vector.shape_cast %106 : vector<1x32x32xf32> to vector<32x32xf32>
    %cst_46 = arith.constant dense<0.000000e+00> : vector<2x32xf32>
    %108 = tpu.matmul %105, %107, %cst_46 {dimension_numbers = #tpu.dot_dimension_numbers<[1], [0], [0], [1], [0, 0, 1, 1], [], []>} : vector<2x32xf32>, vector<32x32xf32>, vector<2x32xf32> -> vector<2x32xf32>
    %109 = arith.addf %108, %63 : vector<2x32xf32>
    %c3 = arith.constant 3 : index
    %c0_47 = arith.constant 0 : index
    %110 = vector.load %arg4[%c3, %c0_47] : memref<12x32xf32, #tpu.memory_space<vmem>>, vector<1x32xf32>
    %111 = vector.shape_cast %110 : vector<1x32xf32> to vector<32xf32>
    %112 = vector.shape_cast %111 : vector<32xf32> to vector<1x32xf32>
    %113 = vector.broadcast %112 : vector<1x32xf32> to vector<2x32xf32>
    %114 = arith.mulf %109, %113 : vector<2x32xf32>
    %c3_48 = arith.constant 3 : index
    %c0_49 = arith.constant 0 : index
    %115 = vector.load %arg5[%c3_48, %c0_49] : memref<12x32xf32, #tpu.memory_space<vmem>>, vector<1x32xf32>
    %116 = vector.shape_cast %115 : vector<1x32xf32> to vector<32xf32>
    %117 = vector.shape_cast %116 : vector<32xf32> to vector<1x32xf32>
    %118 = vector.broadcast %117 : vector<1x32xf32> to vector<2x32xf32>
    %119 = arith.addf %114, %118 : vector<2x32xf32>
    %cst_50 = arith.constant 0.000000e+00 : f32
    %120 = vector.broadcast %cst_50 : f32 to vector<2x32xf32>
    %121 = arith.maximumf %119, %120 : vector<2x32xf32>
    %c3_51 = arith.constant 3 : index
    %c0_52 = arith.constant 0 : index
    %c0_53 = arith.constant 0 : index
    %122 = vector.load %arg6[%c3_51, %c0_52, %c0_53] : memref<12x32x32xf32, #tpu.memory_space<vmem>>, vector<1x32x32xf32>
    %123 = vector.shape_cast %122 : vector<1x32x32xf32> to vector<32x32xf32>
    %cst_54 = arith.constant dense<0.000000e+00> : vector<2x32xf32>
    %124 = tpu.matmul %121, %123, %cst_54 {dimension_numbers = #tpu.dot_dimension_numbers<[1], [0], [0], [1], [0, 0, 1, 1], [], []>} : vector<2x32xf32>, vector<32x32xf32>, vector<2x32xf32> -> vector<2x32xf32>
    %c4 = arith.constant 4 : index
    %c0_55 = arith.constant 0 : index
    %125 = vector.load %arg4[%c4, %c0_55] : memref<12x32xf32, #tpu.memory_space<vmem>>, vector<1x32xf32>
    %126 = vector.shape_cast %125 : vector<1x32xf32> to vector<32xf32>
    %127 = vector.shape_cast %126 : vector<32xf32> to vector<1x32xf32>
    %128 = vector.broadcast %127 : vector<1x32xf32> to vector<2x32xf32>
    %129 = arith.mulf %124, %128 : vector<2x32xf32>
    %c4_56 = arith.constant 4 : index
    %c0_57 = arith.constant 0 : index
    %130 = vector.load %arg5[%c4_56, %c0_57] : memref<12x32xf32, #tpu.memory_space<vmem>>, vector<1x32xf32>
    %131 = vector.shape_cast %130 : vector<1x32xf32> to vector<32xf32>
    %132 = vector.shape_cast %131 : vector<32xf32> to vector<1x32xf32>
    %133 = vector.broadcast %132 : vector<1x32xf32> to vector<2x32xf32>
    %134 = arith.addf %129, %133 : vector<2x32xf32>
    %cst_58 = arith.constant 0.000000e+00 : f32
    %135 = vector.broadcast %cst_58 : f32 to vector<2x32xf32>
    %136 = arith.maximumf %134, %135 : vector<2x32xf32>
    %c4_59 = arith.constant 4 : index
    %c0_60 = arith.constant 0 : index
    %c0_61 = arith.constant 0 : index
    %137 = vector.load %arg6[%c4_59, %c0_60, %c0_61] : memref<12x32x32xf32, #tpu.memory_space<vmem>>, vector<1x32x32xf32>
    %138 = vector.shape_cast %137 : vector<1x32x32xf32> to vector<32x32xf32>
    %cst_62 = arith.constant dense<0.000000e+00> : vector<2x32xf32>
    %139 = tpu.matmul %136, %138, %cst_62 {dimension_numbers = #tpu.dot_dimension_numbers<[1], [0], [0], [1], [0, 0, 1, 1], [], []>} : vector<2x32xf32>, vector<32x32xf32>, vector<2x32xf32> -> vector<2x32xf32>
    %c5 = arith.constant 5 : index
    %c0_63 = arith.constant 0 : index
    %140 = vector.load %arg4[%c5, %c0_63] : memref<12x32xf32, #tpu.memory_space<vmem>>, vector<1x32xf32>
    %141 = vector.shape_cast %140 : vector<1x32xf32> to vector<32xf32>
    %142 = vector.shape_cast %141 : vector<32xf32> to vector<1x32xf32>
    %143 = vector.broadcast %142 : vector<1x32xf32> to vector<2x32xf32>
    %144 = arith.mulf %139, %143 : vector<2x32xf32>
    %c5_64 = arith.constant 5 : index
    %c0_65 = arith.constant 0 : index
    %145 = vector.load %arg5[%c5_64, %c0_65] : memref<12x32xf32, #tpu.memory_space<vmem>>, vector<1x32xf32>
    %146 = vector.shape_cast %145 : vector<1x32xf32> to vector<32xf32>
    %147 = vector.shape_cast %146 : vector<32xf32> to vector<1x32xf32>
    %148 = vector.broadcast %147 : vector<1x32xf32> to vector<2x32xf32>
    %149 = arith.addf %144, %148 : vector<2x32xf32>
    %cst_66 = arith.constant 0.000000e+00 : f32
    %150 = vector.broadcast %cst_66 : f32 to vector<2x32xf32>
    %151 = arith.maximumf %149, %150 : vector<2x32xf32>
    %c5_67 = arith.constant 5 : index
    %c0_68 = arith.constant 0 : index
    %c0_69 = arith.constant 0 : index
    %152 = vector.load %arg6[%c5_67, %c0_68, %c0_69] : memref<12x32x32xf32, #tpu.memory_space<vmem>>, vector<1x32x32xf32>
    %153 = vector.shape_cast %152 : vector<1x32x32xf32> to vector<32x32xf32>
    %cst_70 = arith.constant dense<0.000000e+00> : vector<2x32xf32>
    %154 = tpu.matmul %151, %153, %cst_70 {dimension_numbers = #tpu.dot_dimension_numbers<[1], [0], [0], [1], [0, 0, 1, 1], [], []>} : vector<2x32xf32>, vector<32x32xf32>, vector<2x32xf32> -> vector<2x32xf32>
    %155 = arith.addf %154, %109 : vector<2x32xf32>
    %c6 = arith.constant 6 : index
    %c0_71 = arith.constant 0 : index
    %156 = vector.load %arg4[%c6, %c0_71] : memref<12x32xf32, #tpu.memory_space<vmem>>, vector<1x32xf32>
    %157 = vector.shape_cast %156 : vector<1x32xf32> to vector<32xf32>
    %158 = vector.shape_cast %157 : vector<32xf32> to vector<1x32xf32>
    %159 = vector.broadcast %158 : vector<1x32xf32> to vector<2x32xf32>
    %160 = arith.mulf %155, %159 : vector<2x32xf32>
    %c6_72 = arith.constant 6 : index
    %c0_73 = arith.constant 0 : index
    %161 = vector.load %arg5[%c6_72, %c0_73] : memref<12x32xf32, #tpu.memory_space<vmem>>, vector<1x32xf32>
    %162 = vector.shape_cast %161 : vector<1x32xf32> to vector<32xf32>
    %163 = vector.shape_cast %162 : vector<32xf32> to vector<1x32xf32>
    %164 = vector.broadcast %163 : vector<1x32xf32> to vector<2x32xf32>
    %165 = arith.addf %160, %164 : vector<2x32xf32>
    %cst_74 = arith.constant 0.000000e+00 : f32
    %166 = vector.broadcast %cst_74 : f32 to vector<2x32xf32>
    %167 = arith.maximumf %165, %166 : vector<2x32xf32>
    %c6_75 = arith.constant 6 : index
    %c0_76 = arith.constant 0 : index
    %c0_77 = arith.constant 0 : index
    %168 = vector.load %arg6[%c6_75, %c0_76, %c0_77] : memref<12x32x32xf32, #tpu.memory_space<vmem>>, vector<1x32x32xf32>
    %169 = vector.shape_cast %168 : vector<1x32x32xf32> to vector<32x32xf32>
    %cst_78 = arith.constant dense<0.000000e+00> : vector<2x32xf32>
    %170 = tpu.matmul %167, %169, %cst_78 {dimension_numbers = #tpu.dot_dimension_numbers<[1], [0], [0], [1], [0, 0, 1, 1], [], []>} : vector<2x32xf32>, vector<32x32xf32>, vector<2x32xf32> -> vector<2x32xf32>
    %c7 = arith.constant 7 : index
    %c0_79 = arith.constant 0 : index
    %171 = vector.load %arg4[%c7, %c0_79] : memref<12x32xf32, #tpu.memory_space<vmem>>, vector<1x32xf32>
    %172 = vector.shape_cast %171 : vector<1x32xf32> to vector<32xf32>
    %173 = vector.shape_cast %172 : vector<32xf32> to vector<1x32xf32>
    %174 = vector.broadcast %173 : vector<1x32xf32> to vector<2x32xf32>
    %175 = arith.mulf %170, %174 : vector<2x32xf32>
    %c7_80 = arith.constant 7 : index
    %c0_81 = arith.constant 0 : index
    %176 = vector.load %arg5[%c7_80, %c0_81] : memref<12x32xf32, #tpu.memory_space<vmem>>, vector<1x32xf32>
    %177 = vector.shape_cast %176 : vector<1x32xf32> to vector<32xf32>
    %178 = vector.shape_cast %177 : vector<32xf32> to vector<1x32xf32>
    %179 = vector.broadcast %178 : vector<1x32xf32> to vector<2x32xf32>
    %180 = arith.addf %175, %179 : vector<2x32xf32>
    %cst_82 = arith.constant 0.000000e+00 : f32
    %181 = vector.broadcast %cst_82 : f32 to vector<2x32xf32>
    %182 = arith.maximumf %180, %181 : vector<2x32xf32>
    %c7_83 = arith.constant 7 : index
    %c0_84 = arith.constant 0 : index
    %c0_85 = arith.constant 0 : index
    %183 = vector.load %arg6[%c7_83, %c0_84, %c0_85] : memref<12x32x32xf32, #tpu.memory_space<vmem>>, vector<1x32x32xf32>
    %184 = vector.shape_cast %183 : vector<1x32x32xf32> to vector<32x32xf32>
    %cst_86 = arith.constant dense<0.000000e+00> : vector<2x32xf32>
    %185 = tpu.matmul %182, %184, %cst_86 {dimension_numbers = #tpu.dot_dimension_numbers<[1], [0], [0], [1], [0, 0, 1, 1], [], []>} : vector<2x32xf32>, vector<32x32xf32>, vector<2x32xf32> -> vector<2x32xf32>
    %c8 = arith.constant 8 : index
    %c0_87 = arith.constant 0 : index
    %186 = vector.load %arg4[%c8, %c0_87] : memref<12x32xf32, #tpu.memory_space<vmem>>, vector<1x32xf32>
    %187 = vector.shape_cast %186 : vector<1x32xf32> to vector<32xf32>
    %188 = vector.shape_cast %187 : vector<32xf32> to vector<1x32xf32>
    %189 = vector.broadcast %188 : vector<1x32xf32> to vector<2x32xf32>
    %190 = arith.mulf %185, %189 : vector<2x32xf32>
    %c8_88 = arith.constant 8 : index
    %c0_89 = arith.constant 0 : index
    %191 = vector.load %arg5[%c8_88, %c0_89] : memref<12x32xf32, #tpu.memory_space<vmem>>, vector<1x32xf32>
    %192 = vector.shape_cast %191 : vector<1x32xf32> to vector<32xf32>
    %193 = vector.shape_cast %192 : vector<32xf32> to vector<1x32xf32>
    %194 = vector.broadcast %193 : vector<1x32xf32> to vector<2x32xf32>
    %195 = arith.addf %190, %194 : vector<2x32xf32>
    %cst_90 = arith.constant 0.000000e+00 : f32
    %196 = vector.broadcast %cst_90 : f32 to vector<2x32xf32>
    %197 = arith.maximumf %195, %196 : vector<2x32xf32>
    %c8_91 = arith.constant 8 : index
    %c0_92 = arith.constant 0 : index
    %c0_93 = arith.constant 0 : index
    %198 = vector.load %arg6[%c8_91, %c0_92, %c0_93] : memref<12x32x32xf32, #tpu.memory_space<vmem>>, vector<1x32x32xf32>
    %199 = vector.shape_cast %198 : vector<1x32x32xf32> to vector<32x32xf32>
    %cst_94 = arith.constant dense<0.000000e+00> : vector<2x32xf32>
    %200 = tpu.matmul %197, %199, %cst_94 {dimension_numbers = #tpu.dot_dimension_numbers<[1], [0], [0], [1], [0, 0, 1, 1], [], []>} : vector<2x32xf32>, vector<32x32xf32>, vector<2x32xf32> -> vector<2x32xf32>
    %201 = arith.addf %200, %155 : vector<2x32xf32>
    %c9 = arith.constant 9 : index
    %c0_95 = arith.constant 0 : index
    %202 = vector.load %arg4[%c9, %c0_95] : memref<12x32xf32, #tpu.memory_space<vmem>>, vector<1x32xf32>
    %203 = vector.shape_cast %202 : vector<1x32xf32> to vector<32xf32>
    %204 = vector.shape_cast %203 : vector<32xf32> to vector<1x32xf32>
    %205 = vector.broadcast %204 : vector<1x32xf32> to vector<2x32xf32>
    %206 = arith.mulf %201, %205 : vector<2x32xf32>
    %c9_96 = arith.constant 9 : index
    %c0_97 = arith.constant 0 : index
    %207 = vector.load %arg5[%c9_96, %c0_97] : memref<12x32xf32, #tpu.memory_space<vmem>>, vector<1x32xf32>
    %208 = vector.shape_cast %207 : vector<1x32xf32> to vector<32xf32>
    %209 = vector.shape_cast %208 : vector<32xf32> to vector<1x32xf32>
    %210 = vector.broadcast %209 : vector<1x32xf32> to vector<2x32xf32>
    %211 = arith.addf %206, %210 : vector<2x32xf32>
    %cst_98 = arith.constant 0.000000e+00 : f32
    %212 = vector.broadcast %cst_98 : f32 to vector<2x32xf32>
    %213 = arith.maximumf %211, %212 : vector<2x32xf32>
    %c9_99 = arith.constant 9 : index
    %c0_100 = arith.constant 0 : index
    %c0_101 = arith.constant 0 : index
    %214 = vector.load %arg6[%c9_99, %c0_100, %c0_101] : memref<12x32x32xf32, #tpu.memory_space<vmem>>, vector<1x32x32xf32>
    %215 = vector.shape_cast %214 : vector<1x32x32xf32> to vector<32x32xf32>
    %cst_102 = arith.constant dense<0.000000e+00> : vector<2x32xf32>
    %216 = tpu.matmul %213, %215, %cst_102 {dimension_numbers = #tpu.dot_dimension_numbers<[1], [0], [0], [1], [0, 0, 1, 1], [], []>} : vector<2x32xf32>, vector<32x32xf32>, vector<2x32xf32> -> vector<2x32xf32>
    %c10 = arith.constant 10 : index
    %c0_103 = arith.constant 0 : index
    %217 = vector.load %arg4[%c10, %c0_103] : memref<12x32xf32, #tpu.memory_space<vmem>>, vector<1x32xf32>
    %218 = vector.shape_cast %217 : vector<1x32xf32> to vector<32xf32>
    %219 = vector.shape_cast %218 : vector<32xf32> to vector<1x32xf32>
    %220 = vector.broadcast %219 : vector<1x32xf32> to vector<2x32xf32>
    %221 = arith.mulf %216, %220 : vector<2x32xf32>
    %c10_104 = arith.constant 10 : index
    %c0_105 = arith.constant 0 : index
    %222 = vector.load %arg5[%c10_104, %c0_105] : memref<12x32xf32, #tpu.memory_space<vmem>>, vector<1x32xf32>
    %223 = vector.shape_cast %222 : vector<1x32xf32> to vector<32xf32>
    %224 = vector.shape_cast %223 : vector<32xf32> to vector<1x32xf32>
    %225 = vector.broadcast %224 : vector<1x32xf32> to vector<2x32xf32>
    %226 = arith.addf %221, %225 : vector<2x32xf32>
    %cst_106 = arith.constant 0.000000e+00 : f32
    %227 = vector.broadcast %cst_106 : f32 to vector<2x32xf32>
    %228 = arith.maximumf %226, %227 : vector<2x32xf32>
    %c10_107 = arith.constant 10 : index
    %c0_108 = arith.constant 0 : index
    %c0_109 = arith.constant 0 : index
    %229 = vector.load %arg6[%c10_107, %c0_108, %c0_109] : memref<12x32x32xf32, #tpu.memory_space<vmem>>, vector<1x32x32xf32>
    %230 = vector.shape_cast %229 : vector<1x32x32xf32> to vector<32x32xf32>
    %cst_110 = arith.constant dense<0.000000e+00> : vector<2x32xf32>
    %231 = tpu.matmul %228, %230, %cst_110 {dimension_numbers = #tpu.dot_dimension_numbers<[1], [0], [0], [1], [0, 0, 1, 1], [], []>} : vector<2x32xf32>, vector<32x32xf32>, vector<2x32xf32> -> vector<2x32xf32>
    %c11 = arith.constant 11 : index
    %c0_111 = arith.constant 0 : index
    %232 = vector.load %arg4[%c11, %c0_111] : memref<12x32xf32, #tpu.memory_space<vmem>>, vector<1x32xf32>
    %233 = vector.shape_cast %232 : vector<1x32xf32> to vector<32xf32>
    %234 = vector.shape_cast %233 : vector<32xf32> to vector<1x32xf32>
    %235 = vector.broadcast %234 : vector<1x32xf32> to vector<2x32xf32>
    %236 = arith.mulf %231, %235 : vector<2x32xf32>
    %c11_112 = arith.constant 11 : index
    %c0_113 = arith.constant 0 : index
    %237 = vector.load %arg5[%c11_112, %c0_113] : memref<12x32xf32, #tpu.memory_space<vmem>>, vector<1x32xf32>
    %238 = vector.shape_cast %237 : vector<1x32xf32> to vector<32xf32>
    %239 = vector.shape_cast %238 : vector<32xf32> to vector<1x32xf32>
    %240 = vector.broadcast %239 : vector<1x32xf32> to vector<2x32xf32>
    %241 = arith.addf %236, %240 : vector<2x32xf32>
    %cst_114 = arith.constant 0.000000e+00 : f32
    %242 = vector.broadcast %cst_114 : f32 to vector<2x32xf32>
    %243 = arith.maximumf %241, %242 : vector<2x32xf32>
    %c11_115 = arith.constant 11 : index
    %c0_116 = arith.constant 0 : index
    %c0_117 = arith.constant 0 : index
    %244 = vector.load %arg6[%c11_115, %c0_116, %c0_117] : memref<12x32x32xf32, #tpu.memory_space<vmem>>, vector<1x32x32xf32>
    %245 = vector.shape_cast %244 : vector<1x32x32xf32> to vector<32x32xf32>
    %cst_118 = arith.constant dense<0.000000e+00> : vector<2x32xf32>
    %246 = tpu.matmul %243, %245, %cst_118 {dimension_numbers = #tpu.dot_dimension_numbers<[1], [0], [0], [1], [0, 0, 1, 1], [], []>} : vector<2x32xf32>, vector<32x32xf32>, vector<2x32xf32> -> vector<2x32xf32>
    %247 = arith.addf %246, %201 : vector<2x32xf32>
    %c0_119 = arith.constant 0 : index
    %c0_120 = arith.constant 0 : index
    %248 = vector.load %arg7[%c0_119, %c0_120] : memref<1x32xf32, #tpu.memory_space<vmem>>, vector<1x32xf32>
    %249 = vector.broadcast %248 : vector<1x32xf32> to vector<2x32xf32>
    %250 = arith.mulf %60, %249 : vector<2x32xf32>
    %cst_121 = arith.constant dense<0.000000e+00> : vector<2xf32>
    %251 = vector.multi_reduction <add>, %250, %cst_121 [1] : vector<2x32xf32> to vector<2xf32>
    %252 = vector.shape_cast %251 : vector<2xf32> to vector<2x1xf32>
    %c0_122 = arith.constant 0 : index
    %c0_123 = arith.constant 0 : index
    %253 = vector.load %arg8[%c0_122, %c0_123] : memref<1x32xf32, #tpu.memory_space<vmem>>, vector<1x32xf32>
    %254 = vector.broadcast %253 : vector<1x32xf32> to vector<2x32xf32>
    %255 = arith.mulf %247, %254 : vector<2x32xf32>
    %cst_124 = arith.constant dense<0.000000e+00> : vector<2xf32>
    %256 = vector.multi_reduction <add>, %255, %cst_124 [1] : vector<2x32xf32> to vector<2xf32>
    %257 = vector.shape_cast %256 : vector<2xf32> to vector<2x1xf32>
    %258 = arith.addf %252, %257 : vector<2x1xf32>
    %c0_125 = arith.constant 0 : index
    %c0_126 = arith.constant 0 : index
    %259 = vector.load %arg9[%c0_125, %c0_126] : memref<1x1xf32, #tpu.memory_space<vmem>>, vector<1x1xf32>
    %260 = vector.broadcast %259 : vector<1x1xf32> to vector<2x1xf32>
    %261 = arith.addf %258, %260 : vector<2x1xf32>
    %c0_127 = arith.constant 0 : index
    %c0_128 = arith.constant 0 : index
    %262 = vector.load %arg10[%c0_127, %c0_128] : memref<2x1xf32, #tpu.memory_space<vmem>>, vector<2x1xf32>
    tpu.vector_store %arg10[%c0_127, %c0_128], %261 {strides = array<i32>} : memref<2x1xf32, #tpu.memory_space<vmem>>, vector<2x1xf32>,
    return
  }
}

</mosaic_0001>

<llo_original>
// kernel: petfinder_forward.1
$region0: #{petfinder_forward.1}
  #allocation0 [shape = 'u32[]', space=smem, size = 0x4, offset = 0x4, fixed_abs, tag = 'smem constant byte address 0x4 - core index']
  #allocation1 [shape = 'u32[144,128]{1,0:T(1,128)}', space=vmem, size = 0x12000, scoped, tag = 'internal scratch']
  #allocation2 [shape = 'f32[1,1]{1,0:T(1,128)S(1)}', space=vmem, size = 0x200, scoped, tag = 'scoped memory for petfinder_forward.1']
  %s0 = inlined_call_operand.vmem [shape: f32[2,4,256], index: 0, kind: input, shape index: {}]
  %s1 = inlined_call_operand.vmem [shape: f32[32,4], index: 1, kind: input, shape index: {}]
  %s2 = inlined_call_operand.vmem [shape: f32[2,12], index: 2, kind: input, shape index: {}]
  %s3 = inlined_call_operand.vmem [shape: f32[12,32], index: 3, kind: input, shape index: {}]
  %s4 = inlined_call_operand.vmem [shape: f32[12,32], index: 4, kind: input, shape index: {}]
  %s5 = inlined_call_operand.vmem [shape: f32[12,32], index: 5, kind: input, shape index: {}]
  %s6 = inlined_call_operand.hbm [shape: f32[12,32,32], index: 6, kind: input, shape index: {}]
  %s7 = inlined_call_operand.vmem [shape: f32[1,32], index: 7, kind: input, shape index: {}]
  %s8 = inlined_call_operand.vmem [shape: f32[1,32], index: 8, kind: input, shape index: {}]
  %s9 = inlined_call_operand.<no memory space> [shape: f32[1,1], index: 9, kind: input, shape index: {}]
  %s10 = inlined_call_operand.vmem [shape: f32[2,1], index: 10, kind: output, shape index: {0}]
  %s11 = inlined_call_operand.hbm [shape: f32[2,32], index: 11, kind: output, shape index: {1}]
  %12 = xla_tuple %s10, %s11
  %s13 = sld [smem:[#allocation0]]
  $region62: #{petfinder_forward.1} parent=0
    _
  %s15 = ssub.s32 1, %s13
  %s16 = scalar_select 0, %s15, %s13
  %v17 = vstv %s9
  %18 = vst [vmem:[#allocation2] sm:$0x1] %v17
  $region1: #{petfinder_forward.1} parent=0
    #allocation3 [shape = 'u8[196608]{0}', space=vmem, size = 0x30000, scoped, tag = 'input window, operand 6, single buffered']
    #allocation4 [shape = 's32[1]{0}', space=sflag, size = 0x4, scoped, tag = 'scoped memory for petfinder_forward.1']
    #allocation5 [shape = 's32[1]{0}', space=sflag, size = 0x4, scoped, tag = 'scoped memory for petfinder_forward.1']
    #allocation6 [shape = 'u8[1024]{0}', space=vmem, size = 0x400, scoped, tag = 'output window, operand 1, single buffered']
    %19 = vsyncpa [#allocation4], 0
    %20 = vsyncpa [#allocation5], 0
    // Predicated region
    $region2: #{petfinder_forward.1} parent=1 // pred_check
      _
    $region3: #{petfinder_forward.1} parent=1 // pred_check_branch
      %22 = sbr.rel (0) target = $region5
    $region4: #{petfinder_forward.1} parent=1 // pred_region
      _
    $region5: #{petfinder_forward.1} parent=1 // pred_fallthru
      _
    // Predicated region
    $region6: #{petfinder_forward.1} parent=1 // pred_check
      _
    $region7: #{petfinder_forward.1} parent=1 // pred_check_branch
      %24 = sbr.rel (0) target = $region9
    $region8: #{petfinder_forward.1} parent=1 // pred_region
      _
    $region9: #{petfinder_forward.1} parent=1 // pred_fallthru
      _
    // Predicated region
    $region10: #{petfinder_forward.1} parent=1 // pred_check
      _
    $region11: #{petfinder_forward.1} parent=1 // pred_check_branch
      %26 = sbr.rel (0) target = $region13
    $region12: #{petfinder_forward.1} parent=1 // pred_region
      _
    $region13: #{petfinder_forward.1} parent=1 // pred_fallthru
      _
    // Predicated region
    $region14: #{petfinder_forward.1} parent=1 // pred_check
      _
    $region15: #{petfinder_forward.1} parent=1 // pred_check_branch
      %28 = sbr.rel (0) target = $region17
    $region16: #{petfinder_forward.1} parent=1 // pred_region
      _
    $region17: #{petfinder_forward.1} parent=1 // pred_fallthru
      _
    // Predicated region
    $region18: #{petfinder_forward.1} parent=1 // pred_check
      _
    $region19: #{petfinder_forward.1} parent=1 // pred_check_branch
      %30 = sbr.rel (0) target = $region21
    $region20: #{petfinder_forward.1} parent=1 // pred_region
      _
    $region21: #{petfinder_forward.1} parent=1 // pred_fallthru
      _
    // Predicated region
    $region22: #{petfinder_forward.1} parent=1 // pred_check
      _
    $region23: #{petfinder_forward.1} parent=1 // pred_check_branch
      %32 = sbr.rel (0) target = $region25
    $region24: #{petfinder_forward.1} parent=1 // pred_region
      _
    $region25: #{petfinder_forward.1} parent=1 // pred_fallthru
      _
    // Predicated region
    $region26: #{petfinder_forward.1} parent=1 // pred_check
      _
    $region27: #{petfinder_forward.1} parent=1 // pred_check_branch
      %34 = sbr.rel (0) target = $region29
    $region28: #{petfinder_forward.1} parent=1 // pred_region
      %s36 = ssub.s32 6144, 6144
      %37 = vsyncadd [#allocation4], %s36
      %s38 = sshll.u32 [#allocation3], 4
      %s39 = int_to_ptr.vmem [resolvable:$true] %s38
      %44 = dma.hbm_to_vmem [thread:$0]  %s6, 6144, %s39, [#allocation4], 128, 128, 8
    $region29: #{petfinder_forward.1} parent=1 // pred_fallthru
      _
    // Predicated region
    $region30: #{petfinder_forward.1} parent=1 // pred_check
      _
    $region31: #{petfinder_forward.1} parent=1 // pred_check_branch
      %46 = sbr.rel (0) target = $region33
    $region32: #{petfinder_forward.1} parent=1 // pred_region
      _
    $region33: #{petfinder_forward.1} parent=1 // pred_fallthru
      _
    // Predicated region
    $region34: #{petfinder_forward.1} parent=1 // pred_check
      _
    $region35: #{petfinder_forward.1} parent=1 // pred_check_branch
      %48 = sbr.rel (0) target = $region37
    $region36: #{petfinder_forward.1} parent=1 // pred_region
      _
    $region37: #{petfinder_forward.1} parent=1 // pred_fallthru
      _
    // Predicated region
    $region38: #{petfinder_forward.1} parent=1 // pred_check
      _
    $region39: #{petfinder_forward.1} parent=1 // pred_check_branch
      %50 = sbr.rel (0) target = $region41
    $region40: #{petfinder_forward.1} parent=1 // pred_region
      _
    $region41: #{petfinder_forward.1} parent=1 // pred_fallthru
      _
    // Predicated region
    $region42: #{petfinder_forward.1} parent=1 // pred_check
      _
    $region43: #{petfinder_forward.1} parent=1 // pred_check_branch
      %52 = sbr.rel (0) target = $region45
    $region44: #{petfinder_forward.1} parent=1 // pred_region
      %53 = dma.done [#allocation4], 6144
    $region45: #{petfinder_forward.1} parent=1 // pred_fallthru
      _
    %v54 = vld [vmem:[%s1] sm:$0xff]
    %v55 = vld [vmem:[%s1 + $0x8] sm:$0xff]
    %v56 = vld [vmem:[%s1 + $0x10] sm:$0xff]
    %v57 = vld [vmem:[%s1 + $0x18] sm:$0xff]
    %v58 = vld [vmem:[%s0] sm:$0xff]
    %60 = vset.pattern.permute.xlu0 0
    %61 = vperm.xlu0 %60, %v54
    %v62 = vpop.permute.xlu0 %61
    %65 = vset.pattern.permute.xlu0 0
    %66 = vperm.xlu0 %65, %v55
    %v67 = vpop.permute.xlu0 %66
    %70 = vset.pattern.permute.xlu0 0
    %71 = vperm.xlu0 %70, %v56
    %v72 = vpop.permute.xlu0 %71
    %75 = vset.pattern.permute.xlu0 0
    %76 = vperm.xlu0 %75, %v57
    %v77 = vpop.permute.xlu0 %76
    %v80 = vlaneseq
    %v81 = vshrl.u32 %v80, 7
    %v82 = vsub.s32 0, %v81
    %v83 = vrot.slane %v58, %v82
    %v84 = vlaneseq
    %v85 = vshrl.u32 %v84, 7
    %v86 = vsub.s32 4, %v85
    %v87 = vrot.slane %v58, %v86
    %v90 = vlaneseq
    %v91 = vshrl.u32 %v90, 7
    %v92 = vsub.s32 0, %v91
    %v93 = vrot.slane %v83, %v92
    %v94 = vlaneseq
    %v95 = vshrl.u32 %v94, 7
    %v96 = vsub.s32 0, %v95
    %v97 = vrot.slane %v87, %v96
    %v98 = vmul.f32 %v62, %v93
    %v99 = vmul.f32 %v62, %v97
    %v100 = vmul.f32 %v67, %v93
    %v101 = vmul.f32 %v67, %v97
    %v102 = vmul.f32 %v72, %v93
    %v103 = vmul.f32 %v72, %v97
    %v104 = vmul.f32 %v77, %v93
    %v105 = vmul.f32 %v77, %v97
    %106 = vset.pattern.permute.xlu0 1
    %107 = vperm.xlu0 %106, %v54
    %v108 = vpop.permute.xlu0 %107
    %110 = vset.pattern.permute.xlu0 1
    %111 = vperm.xlu0 %110, %v55
    %v112 = vpop.permute.xlu0 %111
    %114 = vset.pattern.permute.xlu0 1
    %115 = vperm.xlu0 %114, %v56
    %v116 = vpop.permute.xlu0 %115
    %118 = vset.pattern.permute.xlu0 1
    %119 = vperm.xlu0 %118, %v57
    %v120 = vpop.permute.xlu0 %119
    %v122 = vlaneseq
    %v123 = vshrl.u32 %v122, 7
    %v124 = vsub.s32 1, %v123
    %v125 = vrot.slane %v58, %v124
    %v126 = vlaneseq
    %v127 = vshrl.u32 %v126, 7
    %v128 = vsub.s32 5, %v127
    %v129 = vrot.slane %v58, %v128
    %v132 = vlaneseq
    %v133 = vshrl.u32 %v132, 7
    %v134 = vsub.s32 1, %v133
    %v135 = vrot.slane %v125, %v134
    %v136 = vlaneseq
    %v137 = vshrl.u32 %v136, 7
    %v138 = vsub.s32 1, %v137
    %v139 = vrot.slane %v129, %v138
    %v140 = vmul.f32 %v108, %v135
    %v141 = vmul.f32 %v108, %v139
    %v142 = vmul.f32 %v112, %v135
    %v143 = vmul.f32 %v112, %v139
    %v144 = vmul.f32 %v116, %v135
    %v145 = vmul.f32 %v116, %v139
    %v146 = vmul.f32 %v120, %v135
    %v147 = vmul.f32 %v120, %v139
    %v148 = vadd.f32 %v98, %v140
    %v149 = vadd.f32 %v99, %v141
    %v150 = vadd.f32 %v100, %v142
    %v151 = vadd.f32 %v101, %v143
    %v152 = vadd.f32 %v102, %v144
    %v153 = vadd.f32 %v103, %v145
    %v154 = vadd.f32 %v104, %v146
    %v155 = vadd.f32 %v105, %v147
    %156 = vset.pattern.permute.xlu0 2
    %157 = vperm.xlu0 %156, %v54
    %v158 = vpop.permute.xlu0 %157
    %160 = vset.pattern.permute.xlu0 2
    %161 = vperm.xlu0 %160, %v55
    %v162 = vpop.permute.xlu0 %161
    %164 = vset.pattern.permute.xlu0 2
    %165 = vperm.xlu0 %164, %v56
    %v166 = vpop.permute.xlu0 %165
    %168 = vset.pattern.permute.xlu0 2
    %169 = vperm.xlu0 %168, %v57
    %v170 = vpop.permute.xlu0 %169
    %v172 = vlaneseq
    %v173 = vshrl.u32 %v172, 7
    %v174 = vsub.s32 2, %v173
    %v175 = vrot.slane %v58, %v174
    %v176 = vlaneseq
    %v177 = vshrl.u32 %v176, 7
    %v178 = vsub.s32 6, %v177
    %v179 = vrot.slane %v58, %v178
    %v182 = vlaneseq
    %v183 = vshrl.u32 %v182, 7
    %v184 = vsub.s32 2, %v183
    %v185 = vrot.slane %v175, %v184
    %v186 = vlaneseq
    %v187 = vshrl.u32 %v186, 7
    %v188 = vsub.s32 2, %v187
    %v189 = vrot.slane %v179, %v188
    %v190 = vmul.f32 %v158, %v185
    %v191 = vmul.f32 %v158, %v189
    %v192 = vmul.f32 %v162, %v185
    %v193 = vmul.f32 %v162, %v189
    %v194 = vmul.f32 %v166, %v185
    %v195 = vmul.f32 %v166, %v189
    %v196 = vmul.f32 %v170, %v185
    %v197 = vmul.f32 %v170, %v189
    %v198 = vadd.f32 %v148, %v190
    %v199 = vadd.f32 %v149, %v191
    %v200 = vadd.f32 %v150, %v192
    %v201 = vadd.f32 %v151, %v193
    %v202 = vadd.f32 %v152, %v194
    %v203 = vadd.f32 %v153, %v195
    %v204 = vadd.f32 %v154, %v196
    %v205 = vadd.f32 %v155, %v197
    %206 = vset.pattern.permute.xlu0 3
    %207 = vperm.xlu0 %206, %v54
    %v208 = vpop.permute.xlu0 %207
    %210 = vset.pattern.permute.xlu0 3
    %211 = vperm.xlu0 %210, %v55
    %v212 = vpop.permute.xlu0 %211
    %214 = vset.pattern.permute.xlu0 3
    %215 = vperm.xlu0 %214, %v56
    %v216 = vpop.permute.xlu0 %215
    %218 = vset.pattern.permute.xlu0 3
    %219 = vperm.xlu0 %218, %v57
    %v220 = vpop.permute.xlu0 %219
    %v222 = vlaneseq
    %v223 = vshrl.u32 %v222, 7
    %v224 = vsub.s32 3, %v223
    %v225 = vrot.slane %v58, %v224
    %v226 = vlaneseq
    %v227 = vshrl.u32 %v226, 7
    %v228 = vsub.s32 7, %v227
    %v229 = vrot.slane %v58, %v228
    %v232 = vlaneseq
    %v233 = vshrl.u32 %v232, 7
    %v234 = vsub.s32 3, %v233
    %v235 = vrot.slane %v225, %v234
    %v236 = vlaneseq
    %v237 = vshrl.u32 %v236, 7
    %v238 = vsub.s32 3, %v237
    %v239 = vrot.slane %v229, %v238
    %v240 = vmul.f32 %v208, %v235
    %v241 = vmul.f32 %v208, %v239
    %v242 = vmul.f32 %v212, %v235
    %v243 = vmul.f32 %v212, %v239
    %v244 = vmul.f32 %v216, %v235
    %v245 = vmul.f32 %v216, %v239
    %v246 = vmul.f32 %v220, %v235
    %v247 = vmul.f32 %v220, %v239
    %v248 = vadd.f32 %v198, %v240
    %v249 = vadd.f32 %v199, %v241
    %v250 = vadd.f32 %v200, %v242
    %v251 = vadd.f32 %v201, %v243
    %v252 = vadd.f32 %v202, %v244
    %v253 = vadd.f32 %v203, %v245
    %v254 = vadd.f32 %v204, %v246
    %v255 = vadd.f32 %v205, %v247
    %v256 = vmax.f32 %v248, 0.0
    %v257 = vmax.f32 %v249, 0.0
    %v258 = vmax.f32 %v250, 0.0
    %v259 = vmax.f32 %v251, 0.0
    %v260 = vmax.f32 %v252, 0.0
    %v261 = vmax.f32 %v253, 0.0
    %v262 = vmax.f32 %v254, 0.0
    %v263 = vmax.f32 %v255, 0.0
    %264 = vmatprep.subr.mxu0 0.0
    %265 = vmatpush1.xpose.msra.mxu0 0.0
    %266 = vmatprep.subr.mxu0 0.0
    %267 = vmatpush1.xpose.msra.mxu0 0.0
    %268 = vmatprep.subr.mxu0 0.0
    %269 = vmatpush1.xpose.msra.mxu0 0.0
    %270 = vmatprep.subr.mxu0 0.0
    %271 = vmatpush1.xpose.msra.mxu0 0.0
    %272 = vmatprep.subr.mxu0 0.0
    %273 = vmatpush1.xpose.msra.mxu0 0.0
    %274 = vmatprep.subr.mxu0 0.0
    %275 = vmatpush1.xpose.msra.mxu0 0.0
    %276 = vmatprep.subr.mxu0 0.0
    %277 = vmatpush1.xpose.msra.mxu0 0.0
    %278 = vmatprep.subr.mxu0 0.0
    %279 = vmatpush1.xpose.msra.mxu0 0.0
    %280 = vmatprep.subr.mxu0 0.0
    %281 = vmatpush1.xpose.msra.mxu0 0.0
    %282 = vmatprep.subr.mxu0 0.0
    %283 = vmatpush1.xpose.msra.mxu0 0.0
    %284 = vmatprep.subr.mxu0 0.0
    %285 = vmatpush1.xpose.msra.mxu0 0.0
    %286 = vmatprep.subr.mxu0 0.0
    %287 = vmatpush1.xpose.msra.mxu0 0.0
    %288 = vmatprep.subr.mxu0 %v263
    %289 = vmatpush1.xpose.msra.mxu0 %v262
    %290 = vmatprep.subr.mxu0 %v261
    %291 = vmatpush1.xpose.msra.mxu0 %v260
    %292 = vmatprep.subr.mxu0 %v259
    %293 = vmatpush1.xpose.msra.mxu0 %v258
    %294 = vmatprep.subr.mxu0 %v257
    %295 = vmatpush1.xpose.msra.mxu0 %v256
    %296 = vmatprep.subr.mxu0 0.0
    %297 = vmatpush2.xpose.msra.mxu0 0.0
    %298 = vmatprep.subr.mxu0 0.0
    %299 = vmatpush2.xpose.msra.mxu0 0.0
    %300 = vmatprep.subr.mxu0 0.0
    %301 = vmatpush2.xpose.msra.mxu0 0.0
    %302 = vmatprep.subr.mxu0 0.0
    %303 = vmatpush2.xpose.msra.mxu0 0.0
    %304 = vmatprep.subr.mxu0 0.0
    %305 = vmatpush2.xpose.msra.mxu0 0.0
    %306 = vmatprep.subr.mxu0 0.0
    %307 = vmatpush2.xpose.msra.mxu0 0.0
    %308 = vmatprep.subr.mxu0 0.0
    %309 = vmatpush2.xpose.msra.mxu0 0.0
    %310 = vmatprep.subr.mxu0 0.0
    %311 = vmatpush2.xpose.msra.mxu0 0.0
    %312 = vmatprep.subr.mxu0 0.0
    %313 = vmatpush2.xpose.msra.mxu0 0.0
    %314 = vmatprep.subr.mxu0 0.0
    %315 = vmatpush2.xpose.msra.mxu0 0.0
    %316 = vmatprep.subr.mxu0 0.0
    %317 = vmatpush2.xpose.msra.mxu0 0.0
    %318 = vmatprep.subr.mxu0 0.0
    %319 = vmatpush2.xpose.msra.mxu0 0.0
    %320 = vmatprep.subr.mxu0 0.0
    %321 = vmatpush2.xpose.msra.mxu0 0.0
    %322 = vmatprep.subr.mxu0 0.0
    %323 = vmatpush2.xpose.msra.mxu0 0.0
    %324 = vmatprep.subr.mxu0 0.0
    %325 = vmatpush2.xpose.msra.mxu0 0.0
    %326 = vmatprep.subr.mxu0 0.0
    %327 = vmatpush2.xpose.msra.mxu0 0.0
    %328 = vmatprep.mubr.f32.mxu0 0.00390625
    %329 = vmatmul.mubr.f32.gmra.mxu0 0.00390625
    %v330 = vpop.f32.mrf.mxu0
    %v331 = vadd.f32 0.0, %v330
    %v332 = vpop.f32.mrf.mxu0
    %333 = vdwg.mxu0
    %vm334 = vcmask 253952
    %335 = vst.msk [vmem:[#allocation6] sm:$0x1] %vm334, %v331
    %s336 = scalar_lea.vmem %s0, 8
    %v337 = vld [vmem:[%s336] sm:$0xff]
    %v339 = vlaneseq
    %v340 = vshrl.u32 %v339, 7
    %v341 = vsub.s32 0, %v340
    %v342 = vrot.slane %v337, %v341
    %v343 = vlaneseq
    %v344 = vshrl.u32 %v343, 7
    %v345 = vsub.s32 4, %v344
    %v346 = vrot.slane %v337, %v345
    %v349 = vlaneseq
    %v350 = vshrl.u32 %v349, 7
    %v351 = vsub.s32 0, %v350
    %v352 = vrot.slane %v342, %v351
    %v353 = vlaneseq
    %v354 = vshrl.u32 %v353, 7
    %v355 = vsub.s32 0, %v354
    %v356 = vrot.slane %v346, %v355
    %v357 = vmul.f32 %v62, %v352
    %v358 = vmul.f32 %v62, %v356
    %v359 = vmul.f32 %v67, %v352
    %v360 = vmul.f32 %v67, %v356
    %v361 = vmul.f32 %v72, %v352
    %v362 = vmul.f32 %v72, %v356
    %v363 = vmul.f32 %v77, %v352
    %v364 = vmul.f32 %v77, %v356
    %v365 = vlaneseq
    %v366 = vshrl.u32 %v365, 7
    %v367 = vsub.s32 1, %v366
    %v368 = vrot.slane %v337, %v367
    %v369 = vlaneseq
    %v370 = vshrl.u32 %v369, 7
    %v371 = vsub.s32 5, %v370
    %v372 = vrot.slane %v337, %v371
    %v375 = vlaneseq
    %v376 = vshrl.u32 %v375, 7
    %v377 = vsub.s32 1, %v376
    %v378 = vrot.slane %v368, %v377
    %v379 = vlaneseq
    %v380 = vshrl.u32 %v379, 7
    %v381 = vsub.s32 1, %v380
    %v382 = vrot.slane %v372, %v381
    %v383 = vmul.f32 %v108, %v378
    %v384 = vmul.f32 %v108, %v382
    %v385 = vmul.f32 %v112, %v378
    %v386 = vmul.f32 %v112, %v382
    %v387 = vmul.f32 %v116, %v378
    %v388 = vmul.f32 %v116, %v382
    %v389 = vmul.f32 %v120, %v378
    %v390 = vmul.f32 %v120, %v382
    %v391 = vadd.f32 %v357, %v383
    %v392 = vadd.f32 %v358, %v384
    %v393 = vadd.f32 %v359, %v385
    %v394 = vadd.f32 %v360, %v386
    %v395 = vadd.f32 %v361, %v387
    %v396 = vadd.f32 %v362, %v388
    %v397 = vadd.f32 %v363, %v389
    %v398 = vadd.f32 %v364, %v390
    %v399 = vlaneseq
    %v400 = vshrl.u32 %v399, 7
    %v401 = vsub.s32 2, %v400
    %v402 = vrot.slane %v337, %v401
    %v403 = vlaneseq
    %v404 = vshrl.u32 %v403, 7
    %v405 = vsub.s32 6, %v404
    %v406 = vrot.slane %v337, %v405
    %v409 = vlaneseq
    %v410 = vshrl.u32 %v409, 7
    %v411 = vsub.s32 2, %v410
    %v412 = vrot.slane %v402, %v411
    %v413 = vlaneseq
    %v414 = vshrl.u32 %v413, 7
    %v415 = vsub.s32 2, %v414
    %v416 = vrot.slane %v406, %v415
    %v417 = vmul.f32 %v158, %v412
    %v418 = vmul.f32 %v158, %v416
    %v419 = vmul.f32 %v162, %v412
    %v420 = vmul.f32 %v162, %v416
    %v421 = vmul.f32 %v166, %v412
    %v422 = vmul.f32 %v166, %v416
    %v423 = vmul.f32 %v170, %v412
    %v424 = vmul.f32 %v170, %v416
    %v425 = vadd.f32 %v391, %v417
    %v426 = vadd.f32 %v392, %v418
    %v427 = vadd.f32 %v393, %v419
    %v428 = vadd.f32 %v394, %v420
    %v429 = vadd.f32 %v395, %v421
    %v430 = vadd.f32 %v396, %v422
    %v431 = vadd.f32 %v397, %v423
    %v432 = vadd.f32 %v398, %v424
    %v433 = vlaneseq
    %v434 = vshrl.u32 %v433, 7
    %v435 = vsub.s32 3, %v434
    %v436 = vrot.slane %v337, %v435
    %v437 = vlaneseq
    %v438 = vshrl.u32 %v437, 7
    %v439 = vsub.s32 7, %v438
    %v440 = vrot.slane %v337, %v439
    %v443 = vlaneseq
    %v444 = vshrl.u32 %v443, 7
    %v445 = vsub.s32 3, %v444
    %v446 = vrot.slane %v436, %v445
    %v447 = vlaneseq
    %v448 = vshrl.u32 %v447, 7
    %v449 = vsub.s32 3, %v448
    %v450 = vrot.slane %v440, %v449
    %v451 = vmul.f32 %v208, %v446
    %v452 = vmul.f32 %v208, %v450
    %v453 = vmul.f32 %v212, %v446
    %v454 = vmul.f32 %v212, %v450
    %v455 = vmul.f32 %v216, %v446
    %v456 = vmul.f32 %v216, %v450
    %v457 = vmul.f32 %v220, %v446
    %v458 = vmul.f32 %v220, %v450
    %v459 = vadd.f32 %v425, %v451
    %v460 = vadd.f32 %v426, %v452
    %v461 = vadd.f32 %v427, %v453
    %v462 = vadd.f32 %v428, %v454
    %v463 = vadd.f32 %v429, %v455
    %v464 = vadd.f32 %v430, %v456
    %v465 = vadd.f32 %v431, %v457
    %v466 = vadd.f32 %v432, %v458
    %v467 = vmax.f32 %v459, 0.0
    %v468 = vmax.f32 %v460, 0.0
    %v469 = vmax.f32 %v461, 0.0
    %v470 = vmax.f32 %v462, 0.0
    %v471 = vmax.f32 %v463, 0.0
    %v472 = vmax.f32 %v464, 0.0
    %v473 = vmax.f32 %v465, 0.0
    %v474 = vmax.f32 %v466, 0.0
    %475 = vmatprep.subr.mxu0 0.0
    %476 = vmatpush1.xpose.msra.mxu0 0.0
    %477 = vmatprep.subr.mxu0 0.0
    %478 = vmatpush1.xpose.msra.mxu0 0.0
    %479 = vmatprep.subr.mxu0 0.0
    %480 = vmatpush1.xpose.msra.mxu0 0.0
    %481 = vmatprep.subr.mxu0 0.0
    %482 = vmatpush1.xpose.msra.mxu0 0.0
    %483 = vmatprep.subr.mxu0 0.0
    %484 = vmatpush1.xpose.msra.mxu0 0.0
    %485 = vmatprep.subr.mxu0 0.0
    %486 = vmatpush1.xpose.msra.mxu0 0.0
    %487 = vmatprep.subr.mxu0 0.0
    %488 = vmatpush1.xpose.msra.mxu0 0.0
    %489 = vmatprep.subr.mxu0 0.0
    %490 = vmatpush1.xpose.msra.mxu0 0.0
    %491 = vmatprep.subr.mxu0 0.0
    %492 = vmatpush1.xpose.msra.mxu0 0.0
    %493 = vmatprep.subr.mxu0 0.0
    %494 = vmatpush1.xpose.msra.mxu0 0.0
    %495 = vmatprep.subr.mxu0 0.0
    %496 = vmatpush1.xpose.msra.mxu0 0.0
    %497 = vmatprep.subr.mxu0 0.0
    %498 = vmatpush1.xpose.msra.mxu0 0.0
    %499 = vmatprep.subr.mxu0 %v474
    %500 = vmatpush1.xpose.msra.mxu0 %v473
    %501 = vmatprep.subr.mxu0 %v472
    %502 = vmatpush1.xpose.msra.mxu0 %v471
    %503 = vmatprep.subr.mxu0 %v470
    %504 = vmatpush1.xpose.msra.mxu0 %v469
    %505 = vmatprep.subr.mxu0 %v468
    %506 = vmatpush1.xpose.msra.mxu0 %v467
    %507 = vmatprep.subr.mxu0 0.0
    %508 = vmatpush2.xpose.msra.mxu0 0.0
    %509 = vmatprep.subr.mxu0 0.0
    %510 = vmatpush2.xpose.msra.mxu0 0.0
    %511 = vmatprep.subr.mxu0 0.0
    %512 = vmatpush2.xpose.msra.mxu0 0.0
    %513 = vmatprep.subr.mxu0 0.0
    %514 = vmatpush2.xpose.msra.mxu0 0.0
    %515 = vmatprep.subr.mxu0 0.0
    %516 = vmatpush2.xpose.msra.mxu0 0.0
    %517 = vmatprep.subr.mxu0 0.0
    %518 = vmatpush2.xpose.msra.mxu0 0.0
    %519 = vmatprep.subr.mxu0 0.0
    %520 = vmatpush2.xpose.msra.mxu0 0.0
    %521 = vmatprep.subr.mxu0 0.0
    %522 = vmatpush2.xpose.msra.mxu0 0.0
    %523 = vmatprep.subr.mxu0 0.0
    %524 = vmatpush2.xpose.msra.mxu0 0.0
    %525 = vmatprep.subr.mxu0 0.0
    %526 = vmatpush2.xpose.msra.mxu0 0.0
    %527 = vmatprep.subr.mxu0 0.0
    %528 = vmatpush2.xpose.msra.mxu0 0.0
    %529 = vmatprep.subr.mxu0 0.0
    %530 = vmatpush2.xpose.msra.mxu0 0.0
    %531 = vmatprep.subr.mxu0 0.0
    %532 = vmatpush2.xpose.msra.mxu0 0.0
    %533 = vmatprep.subr.mxu0 0.0
    %534 = vmatpush2.xpose.msra.mxu0 0.0
    %535 = vmatprep.subr.mxu0 0.0
    %536 = vmatpush2.xpose.msra.mxu0 0.0
    %537 = vmatprep.subr.mxu0 0.0
    %538 = vmatpush2.xpose.msra.mxu0 0.0
    %539 = vmatprep.mubr.f32.mxu0 0.00390625
    %540 = vmatmul.mubr.f32.gmra.mxu0 0.00390625
    %v541 = vpop.f32.mrf.mxu0
    %v542 = vadd.f32 0.0, %v541
    %v543 = vpop.f32.mrf.mxu0
    %544 = vdwg.mxu0
    %545 = vst.msk [vmem:[#allocation6 + $0x1] sm:$0x1] %vm334, %v542
    %v546 = vld [vmem:[#allocation6] sm:$0x3]
    %v547 = vld [vmem:[%s2] sm:$0x3]
    %v548 = vld [vmem:[%s3] sm:$0xff]
    %v549 = vld [vmem:[%s3 + $0x8] sm:$0xf]
    %vm550 = vcmask 97280
    %v552 = vsel %vm550, %v547, 0
    %vm554 = vcmask 1043456
    %v556 = vsel %vm554, %v549, 0
    %558 = vmatprep.subr.mxu0 0.0
    %559 = vmatpush1.msra.mxu0 0.0
    %560 = vmatprep.subr.mxu0 0.0
    %561 = vmatpush1.msra.mxu0 0.0
    %562 = vmatprep.subr.mxu0 0.0
    %563 = vmatpush1.msra.mxu0 0.0
    %564 = vmatprep.subr.mxu0 0.0
    %565 = vmatpush1.msra.mxu0 0.0
    %566 = vmatprep.subr.mxu0 0.0
    %567 = vmatpush1.msra.mxu0 0.0
    %568 = vmatprep.subr.mxu0 0.0
    %569 = vmatpush1.msra.mxu0 0.0
    %570 = vmatprep.subr.mxu0 0.0
    %571 = vmatpush1.msra.mxu0 0.0
    %572 = vmatprep.subr.mxu0 0.0
    %573 = vmatpush1.msra.mxu0 0.0
    %574 = vmatprep.subr.mxu0 0.0
    %575 = vmatpush1.msra.mxu0 0.0
    %576 = vmatprep.subr.mxu0 0.0
    %577 = vmatpush1.msra.mxu0 0.0
    %578 = vmatprep.subr.mxu0 0.0
    %579 = vmatpush1.msra.mxu0 0.0
    %580 = vmatprep.subr.mxu0 0.0
    %581 = vmatpush1.msra.mxu0 0.0
    %582 = vmatprep.subr.mxu0 0.0
    %583 = vmatpush1.msra.mxu0 0.0
    %584 = vmatprep.subr.mxu0 0.0
    %585 = vmatpush1.msra.mxu0 0.0
    %586 = vmatprep.subr.mxu0 0.0
    %587 = vmatpush1.msra.mxu0 %v556
    %588 = vmatprep.subr.mxu0 0.0
    %589 = vmatpush1.msra.mxu0 %v548
    %590 = vmatprep.subr.mxu0 0.0
    %591 = vmatpush2.msra.mxu0 0.0
    %592 = vmatprep.subr.mxu0 0.0
    %593 = vmatpush2.msra.mxu0 0.0
    %594 = vmatprep.subr.mxu0 0.0
    %595 = vmatpush2.msra.mxu0 0.0
    %596 = vmatprep.subr.mxu0 0.0
    %597 = vmatpush2.msra.mxu0 0.0
    %598 = vmatprep.subr.mxu0 0.0
    %599 = vmatpush2.msra.mxu0 0.0
    %600 = vmatprep.subr.mxu0 0.0
    %601 = vmatpush2.msra.mxu0 0.0
    %602 = vmatprep.subr.mxu0 0.0
    %603 = vmatpush2.msra.mxu0 0.0
    %604 = vmatprep.subr.mxu0 0.0
    %605 = vmatpush2.msra.mxu0 0.0
    %606 = vmatprep.subr.mxu0 0.0
    %607 = vmatpush2.msra.mxu0 0.0
    %608 = vmatprep.subr.mxu0 0.0
    %609 = vmatpush2.msra.mxu0 0.0
    %610 = vmatprep.subr.mxu0 0.0
    %611 = vmatpush2.msra.mxu0 0.0
    %612 = vmatprep.subr.mxu0 0.0
    %613 = vmatpush2.msra.mxu0 0.0
    %614 = vmatprep.subr.mxu0 0.0
    %615 = vmatpush2.msra.mxu0 0.0
    %616 = vmatprep.subr.mxu0 0.0
    %617 = vmatpush2.msra.mxu0 0.0
    %618 = vmatprep.subr.mxu0 0.0
    %619 = vmatpush2.msra.mxu0 0.0
    %620 = vmatprep.subr.mxu0 0.0
    %621 = vmatpush2.msra.mxu0 0.0
    %622 = vmatprep.mubr.f32.mxu0 0.0
    %623 = vmatmul.mubr.f32.gmra.mxu0 %v552
    %v624 = vpop.f32.mrf.mxu0
    %v625 = vadd.f32 0.0, %v624
    %v626 = vpop.f32.mrf.mxu0
    %627 = vdwg.mxu0
    %v628 = vld [vmem:[%s4] sm:$0x1]
    %v629 = vlaneseq
    %v630 = vshrl.u32 %v629, 7
    %v631 = vsub.s32 0, %v630
    %v632 = vrot.slane %v628, %v631
    %v633 = vmul.f32 %v625, %v632
    %v634 = vld [vmem:[%s5] sm:$0x1]
    %v635 = vlaneseq
    %v636 = vshrl.u32 %v635, 7
    %v637 = vsub.s32 0, %v636
    %v638 = vrot.slane %v634, %v637
    %v639 = vadd.f32 %v633, %v638
    %v640 = vmax.f32 %v639, 0.0
    %v641 = vld [vmem:[#allocation3] sm:$0xff]
    %v642 = vld [vmem:[#allocation3 + $0x8] sm:$0xff]
    %v643 = vld [vmem:[#allocation3 + $0x10] sm:$0xff]
    %v644 = vld [vmem:[#allocation3 + $0x18] sm:$0xff]
    %vm645 = vcmask 261120
    %v647 = vsel %vm645, %v640, 0
    %649 = vmatprep.subr.mxu0 0.0
    %650 = vmatpush1.msra.mxu0 0.0
    %651 = vmatprep.subr.mxu0 0.0
    %652 = vmatpush1.msra.mxu0 0.0
    %653 = vmatprep.subr.mxu0 0.0
    %654 = vmatpush1.msra.mxu0 0.0
    %655 = vmatprep.subr.mxu0 0.0
    %656 = vmatpush1.msra.mxu0 0.0
    %657 = vmatprep.subr.mxu0 0.0
    %658 = vmatpush1.msra.mxu0 0.0
    %659 = vmatprep.subr.mxu0 0.0
    %660 = vmatpush1.msra.mxu0 0.0
    %661 = vmatprep.subr.mxu0 0.0
    %662 = vmatpush1.msra.mxu0 0.0
    %663 = vmatprep.subr.mxu0 0.0
    %664 = vmatpush1.msra.mxu0 0.0
    %665 = vmatprep.subr.mxu0 0.0
    %666 = vmatpush1.msra.mxu0 0.0
    %667 = vmatprep.subr.mxu0 0.0
    %668 = vmatpush1.msra.mxu0 0.0
    %669 = vmatprep.subr.mxu0 0.0
    %670 = vmatpush1.msra.mxu0 0.0
    %671 = vmatprep.subr.mxu0 0.0
    %672 = vmatpush1.msra.mxu0 0.0
    %673 = vmatprep.subr.mxu0 0.0
    %674 = vmatpush1.msra.mxu0 %v644
    %675 = vmatprep.subr.mxu0 0.0
    %676 = vmatpush1.msra.mxu0 %v643
    %677 = vmatprep.subr.mxu0 0.0
    %678 = vmatpush1.msra.mxu0 %v642
    %679 = vmatprep.subr.mxu0 0.0
    %680 = vmatpush1.msra.mxu0 %v641
    %681 = vmatprep.subr.mxu0 0.0
    %682 = vmatpush2.msra.mxu0 0.0
    %683 = vmatprep.subr.mxu0 0.0
    %684 = vmatpush2.msra.mxu0 0.0
    %685 = vmatprep.subr.mxu0 0.0
    %686 = vmatpush2.msra.mxu0 0.0
    %687 = vmatprep.subr.mxu0 0.0
    %688 = vmatpush2.msra.mxu0 0.0
    %689 = vmatprep.subr.mxu0 0.0
    %690 = vmatpush2.msra.mxu0 0.0
    %691 = vmatprep.subr.mxu0 0.0
    %692 = vmatpush2.msra.mxu0 0.0
    %693 = vmatprep.subr.mxu0 0.0
    %694 = vmatpush2.msra.mxu0 0.0
    %695 = vmatprep.subr.mxu0 0.0
    %696 = vmatpush2.msra.mxu0 0.0
    %697 = vmatprep.subr.mxu0 0.0
    %698 = vmatpush2.msra.mxu0 0.0
    %699 = vmatprep.subr.mxu0 0.0
    %700 = vmatpush2.msra.mxu0 0.0
    %701 = vmatprep.subr.mxu0 0.0
    %702 = vmatpush2.msra.mxu0 0.0
    %703 = vmatprep.subr.mxu0 0.0
    %704 = vmatpush2.msra.mxu0 0.0
    %705 = vmatprep.subr.mxu0 0.0
    %706 = vmatpush2.msra.mxu0 0.0
    %707 = vmatprep.subr.mxu0 0.0
    %708 = vmatpush2.msra.mxu0 0.0
    %709 = vmatprep.subr.mxu0 0.0
    %710 = vmatpush2.msra.mxu0 0.0
    %711 = vmatprep.subr.mxu0 0.0
    %712 = vmatpush2.msra.mxu0 0.0
    %713 = vmatprep.mubr.f32.mxu0 0.0
    %714 = vmatmul.mubr.f32.gmra.mxu0 %v647
    %v715 = vpop.f32.mrf.mxu0
    %v716 = vadd.f32 0.0, %v715
    %v717 = vpop.f32.mrf.mxu0
    %718 = vdwg.mxu0
    %v719 = vld [vmem:[%s4 + $0x1] sm:$0x1]
    %v720 = vlaneseq
    %v721 = vshrl.u32 %v720, 7
    %v722 = vsub.s32 0, %v721
    %v723 = vrot.slane %v719, %v722
    %v724 = vmul.f32 %v716, %v723
    %v725 = vld [vmem:[%s5 + $0x1] sm:$0x1]
    %v726 = vlaneseq
    %v727 = vshrl.u32 %v726, 7
    %v728 = vsub.s32 0, %v727
    %v729 = vrot.slane %v725, %v728
    %v730 = vadd.f32 %v724, %v729
    %v731 = vmax.f32 %v730, 0.0
    %s732 = scalar_lea.vmem [#allocation3], 32
    %v733 = vld [vmem:[%s732] sm:$0xff]
    %v734 = vld [vmem:[%s732 + $0x8] sm:$0xff]
    %v735 = vld [vmem:[%s732 + $0x10] sm:$0xff]
    %v736 = vld [vmem:[%s732 + $0x18] sm:$0xff]
    %v738 = vsel %vm645, %v731, 0
    %740 = vmatprep.subr.mxu0 0.0
    %741 = vmatpush1.msra.mxu0 0.0
    %742 = vmatprep.subr.mxu0 0.0
    %743 = vmatpush1.msra.mxu0 0.0
    %744 = vmatprep.subr.mxu0 0.0
    %745 = vmatpush1.msra.mxu0 0.0
    %746 = vmatprep.subr.mxu0 0.0
    %747 = vmatpush1.msra.mxu0 0.0
    %748 = vmatprep.subr.mxu0 0.0
    %749 = vmatpush1.msra.mxu0 0.0
    %750 = vmatprep.subr.mxu0 0.0
    %751 = vmatpush1.msra.mxu0 0.0
    %752 = vmatprep.subr.mxu0 0.0
    %753 = vmatpush1.msra.mxu0 0.0
    %754 = vmatprep.subr.mxu0 0.0
    %755 = vmatpush1.msra.mxu0 0.0
    %756 = vmatprep.subr.mxu0 0.0
    %757 = vmatpush1.msra.mxu0 0.0
    %758 = vmatprep.subr.mxu0 0.0
    %759 = vmatpush1.msra.mxu0 0.0
    %760 = vmatprep.subr.mxu0 0.0
    %761 = vmatpush1.msra.mxu0 0.0
    %762 = vmatprep.subr.mxu0 0.0
    %763 = vmatpush1.msra.mxu0 0.0
    %764 = vmatprep.subr.mxu0 0.0
    %765 = vmatpush1.msra.mxu0 %v736
    %766 = vmatprep.subr.mxu0 0.0
    %767 = vmatpush1.msra.mxu0 %v735
    %768 = vmatprep.subr.mxu0 0.0
    %769 = vmatpush1.msra.mxu0 %v734
    %770 = vmatprep.subr.mxu0 0.0
    %771 = vmatpush1.msra.mxu0 %v733
    %772 = vmatprep.subr.mxu0 0.0
    %773 = vmatpush2.msra.mxu0 0.0
    %774 = vmatprep.subr.mxu0 0.0
    %775 = vmatpush2.msra.mxu0 0.0
    %776 = vmatprep.subr.mxu0 0.0
    %777 = vmatpush2.msra.mxu0 0.0
    %778 = vmatprep.subr.mxu0 0.0
    %779 = vmatpush2.msra.mxu0 0.0
    %780 = vmatprep.subr.mxu0 0.0
    %781 = vmatpush2.msra.mxu0 0.0
    %782 = vmatprep.subr.mxu0 0.0
    %783 = vmatpush2.msra.mxu0 0.0
    %784 = vmatprep.subr.mxu0 0.0
    %785 = vmatpush2.msra.mxu0 0.0
    %786 = vmatprep.subr.mxu0 0.0
    %787 = vmatpush2.msra.mxu0 0.0
    %788 = vmatprep.subr.mxu0 0.0
    %789 = vmatpush2.msra.mxu0 0.0
    %790 = vmatprep.subr.mxu0 0.0
    %791 = vmatpush2.msra.mxu0 0.0
    %792 = vmatprep.subr.mxu0 0.0
    %793 = vmatpush2.msra.mxu0 0.0
    %794 = vmatprep.subr.mxu0 0.0
    %795 = vmatpush2.msra.mxu0 0.0
    %796 = vmatprep.subr.mxu0 0.0
    %797 = vmatpush2.msra.mxu0 0.0
    %798 = vmatprep.subr.mxu0 0.0
    %799 = vmatpush2.msra.mxu0 0.0
    %800 = vmatprep.subr.mxu0 0.0
    %801 = vmatpush2.msra.mxu0 0.0
    %802 = vmatprep.subr.mxu0 0.0
    %803 = vmatpush2.msra.mxu0 0.0
    %804 = vmatprep.mubr.f32.mxu0 0.0
    %805 = vmatmul.mubr.f32.gmra.mxu0 %v738
    %v806 = vpop.f32.mrf.mxu0
    %v807 = vadd.f32 0.0, %v806
    %v808 = vpop.f32.mrf.mxu0
    %809 = vdwg.mxu0
    %v810 = vld [vmem:[%s4 + $0x2] sm:$0x1]
    %v811 = vlaneseq
    %v812 = vshrl.u32 %v811, 7
    %v813 = vsub.s32 0, %v812
    %v814 = vrot.slane %v810, %v813
    %v815 = vmul.f32 %v807, %v814
    %v816 = vld [vmem:[%s5 + $0x2] sm:$0x1]
    %v817 = vlaneseq
    %v818 = vshrl.u32 %v817, 7
    %v819 = vsub.s32 0, %v818
    %v820 = vrot.slane %v816, %v819
    %v821 = vadd.f32 %v815, %v820
    %v822 = vmax.f32 %v821, 0.0
    %s823 = scalar_lea.vmem [#allocation3], 64
    %v824 = vld [vmem:[%s823] sm:$0xff]
    %v825 = vld [vmem:[%s823 + $0x8] sm:$0xff]
    %v826 = vld [vmem:[%s823 + $0x10] sm:$0xff]
    %v827 = vld [vmem:[%s823 + $0x18] sm:$0xff]
    %v829 = vsel %vm645, %v822, 0
    %831 = vmatprep.subr.mxu0 0.0
    %832 = vmatpush1.msra.mxu0 0.0
    %833 = vmatprep.subr.mxu0 0.0
    %834 = vmatpush1.msra.mxu0 0.0
    %835 = vmatprep.subr.mxu0 0.0
    %836 = vmatpush1.msra.mxu0 0.0
    %837 = vmatprep.subr.mxu0 0.0
    %838 = vmatpush1.msra.mxu0 0.0
    %839 = vmatprep.subr.mxu0 0.0
    %840 = vmatpush1.msra.mxu0 0.0
    %841 = vmatprep.subr.mxu0 0.0
    %842 = vmatpush1.msra.mxu0 0.0
    %843 = vmatprep.subr.mxu0 0.0
    %844 = vmatpush1.msra.mxu0 0.0
    %845 = vmatprep.subr.mxu0 0.0
    %846 = vmatpush1.msra.mxu0 0.0
    %847 = vmatprep.subr.mxu0 0.0
    %848 = vmatpush1.msra.mxu0 0.0
    %849 = vmatprep.subr.mxu0 0.0
    %850 = vmatpush1.msra.mxu0 0.0
    %851 = vmatprep.subr.mxu0 0.0
    %852 = vmatpush1.msra.mxu0 0.0
    %853 = vmatprep.subr.mxu0 0.0
    %854 = vmatpush1.msra.mxu0 0.0
    %855 = vmatprep.subr.mxu0 0.0
    %856 = vmatpush1.msra.mxu0 %v827
    %857 = vmatprep.subr.mxu0 0.0
    %858 = vmatpush1.msra.mxu0 %v826
    %859 = vmatprep.subr.mxu0 0.0
    %860 = vmatpush1.msra.mxu0 %v825
    %861 = vmatprep.subr.mxu0 0.0
    %862 = vmatpush1.msra.mxu0 %v824
    %863 = vmatprep.subr.mxu0 0.0
    %864 = vmatpush2.msra.mxu0 0.0
    %865 = vmatprep.subr.mxu0 0.0
    %866 = vmatpush2.msra.mxu0 0.0
    %867 = vmatprep.subr.mxu0 0.0
    %868 = vmatpush2.msra.mxu0 0.0
    %869 = vmatprep.subr.mxu0 0.0
    %870 = vmatpush2.msra.mxu0 0.0
    %871 = vmatprep.subr.mxu0 0.0
    %872 = vmatpush2.msra.mxu0 0.0
    %873 = vmatprep.subr.mxu0 0.0
    %874 = vmatpush2.msra.mxu0 0.0
    %875 = vmatprep.subr.mxu0 0.0
    %876 = vmatpush2.msra.mxu0 0.0
    %877 = vmatprep.subr.mxu0 0.0
    %878 = vmatpush2.msra.mxu0 0.0
    %879 = vmatprep.subr.mxu0 0.0
    %880 = vmatpush2.msra.mxu0 0.0
    %881 = vmatprep.subr.mxu0 0.0
    %882 = vmatpush2.msra.mxu0 0.0
    %883 = vmatprep.subr.mxu0 0.0
    %884 = vmatpush2.msra.mxu0 0.0
    %885 = vmatprep.subr.mxu0 0.0
    %886 = vmatpush2.msra.mxu0 0.0
    %887 = vmatprep.subr.mxu0 0.0
    %888 = vmatpush2.msra.mxu0 0.0
    %889 = vmatprep.subr.mxu0 0.0
    %890 = vmatpush2.msra.mxu0 0.0
    %891 = vmatprep.subr.mxu0 0.0
    %892 = vmatpush2.msra.mxu0 0.0
    %893 = vmatprep.subr.mxu0 0.0
    %894 = vmatpush2.msra.mxu0 0.0
    %895 = vmatprep.mubr.f32.mxu0 0.0
    %896 = vmatmul.mubr.f32.gmra.mxu0 %v829
    %v897 = vpop.f32.mrf.mxu0
    %v898 = vadd.f32 %v625, %v897
    %v899 = vpop.f32.mrf.mxu0
    %900 = vdwg.mxu0
    %v901 = vld [vmem:[%s4 + $0x3] sm:$0x1]
    %v902 = vlaneseq
    %v903 = vshrl.u32 %v902, 7
    %v904 = vsub.s32 0, %v903
    %v905 = vrot.slane %v901, %v904
    %v906 = vmul.f32 %v898, %v905
    %v907 = vld [vmem:[%s5 + $0x3] sm:$0x1]
    %v908 = vlaneseq
    %v909 = vshrl.u32 %v908, 7
    %v910 = vsub.s32 0, %v909
    %v911 = vrot.slane %v907, %v910
    %v912 = vadd.f32 %v906, %v911
    %v913 = vmax.f32 %v912, 0.0
    %s914 = scalar_lea.vmem [#allocation3], 96
    %v915 = vld [vmem:[%s914] sm:$0xff]
    %v916 = vld [vmem:[%s914 + $0x8] sm:$0xff]
    %v917 = vld [vmem:[%s914 + $0x10] sm:$0xff]
    %v918 = vld [vmem:[%s914 + $0x18] sm:$0xff]
    %v920 = vsel %vm645, %v913, 0
    %922 = vmatprep.subr.mxu0 0.0
    %923 = vmatpush1.msra.mxu0 0.0
    %924 = vmatprep.subr.mxu0 0.0
    %925 = vmatpush1.msra.mxu0 0.0
    %926 = vmatprep.subr.mxu0 0.0
    %927 = vmatpush1.msra.mxu0 0.0
    %928 = vmatprep.subr.mxu0 0.0
    %929 = vmatpush1.msra.mxu0 0.0
    %930 = vmatprep.subr.mxu0 0.0
    %931 = vmatpush1.msra.mxu0 0.0
    %932 = vmatprep.subr.mxu0 0.0
    %933 = vmatpush1.msra.mxu0 0.0
    %934 = vmatprep.subr.mxu0 0.0
    %935 = vmatpush1.msra.mxu0 0.0
    %936 = vmatprep.subr.mxu0 0.0
    %937 = vmatpush1.msra.mxu0 0.0
    %938 = vmatprep.subr.mxu0 0.0
    %939 = vmatpush1.msra.mxu0 0.0
    %940 = vmatprep.subr.mxu0 0.0
    %941 = vmatpush1.msra.mxu0 0.0
    %942 = vmatprep.subr.mxu0 0.0
    %943 = vmatpush1.msra.mxu0 0.0
    %944 = vmatprep.subr.mxu0 0.0
    %945 = vmatpush1.msra.mxu0 0.0
    %946 = vmatprep.subr.mxu0 0.0
    %947 = vmatpush1.msra.mxu0 %v918
    %948 = vmatprep.subr.mxu0 0.0
    %949 = vmatpush1.msra.mxu0 %v917
    %950 = vmatprep.subr.mxu0 0.0
    %951 = vmatpush1.msra.mxu0 %v916
    %952 = vmatprep.subr.mxu0 0.0
    %953 = vmatpush1.msra.mxu0 %v915
    %954 = vmatprep.subr.mxu0 0.0
    %955 = vmatpush2.msra.mxu0 0.0
    %956 = vmatprep.subr.mxu0 0.0
    %957 = vmatpush2.msra.mxu0 0.0
    %958 = vmatprep.subr.mxu0 0.0
    %959 = vmatpush2.msra.mxu0 0.0
    %960 = vmatprep.subr.mxu0 0.0
    %961 = vmatpush2.msra.mxu0 0.0
    %962 = vmatprep.subr.mxu0 0.0
    %963 = vmatpush2.msra.mxu0 0.0
    %964 = vmatprep.subr.mxu0 0.0
    %965 = vmatpush2.msra.mxu0 0.0
    %966 = vmatprep.subr.mxu0 0.0
    %967 = vmatpush2.msra.mxu0 0.0
    %968 = vmatprep.subr.mxu0 0.0
    %969 = vmatpush2.msra.mxu0 0.0
    %970 = vmatprep.subr.mxu0 0.0
    %971 = vmatpush2.msra.mxu0 0.0
    %972 = vmatprep.subr.mxu0 0.0
    %973 = vmatpush2.msra.mxu0 0.0
    %974 = vmatprep.subr.mxu0 0.0
    %975 = vmatpush2.msra.mxu0 0.0
    %976 = vmatprep.subr.mxu0 0.0
    %977 = vmatpush2.msra.mxu0 0.0
    %978 = vmatprep.subr.mxu0 0.0
    %979 = vmatpush2.msra.mxu0 0.0
    %980 = vmatprep.subr.mxu0 0.0
    %981 = vmatpush2.msra.mxu0 0.0
    %982 = vmatprep.subr.mxu0 0.0
    %983 = vmatpush2.msra.mxu0 0.0
    %984 = vmatprep.subr.mxu0 0.0
    %985 = vmatpush2.msra.mxu0 0.0
    %986 = vmatprep.mubr.f32.mxu0 0.0
    %987 = vmatmul.mubr.f32.gmra.mxu0 %v920
    %v988 = vpop.f32.mrf.mxu0
    %v989 = vadd.f32 0.0, %v988
    %v990 = vpop.f32.mrf.mxu0
    %991 = vdwg.mxu0
    %v992 = vld [vmem:[%s4 + $0x4] sm:$0x1]
    %v993 = vlaneseq
    %v994 = vshrl.u32 %v993, 7
    %v995 = vsub.s32 0, %v994
    %v996 = vrot.slane %v992, %v995
    %v997 = vmul.f32 %v989, %v996
    %v998 = vld [vmem:[%s5 + $0x4] sm:$0x1]
    %v999 = vlaneseq
    %v1000 = vshrl.u32 %v999, 7
    %v1001 = vsub.s32 0, %v1000
    %v1002 = vrot.slane %v998, %v1001
    %v1003 = vadd.f32 %v997, %v1002
    %v1004 = vmax.f32 %v1003, 0.0
    %s1005 = scalar_lea.vmem [#allocation3], 128
    %v1006 = vld [vmem:[%s1005] sm:$0xff]
    %v1007 = vld [vmem:[%s1005 + $0x8] sm:$0xff]
    %v1008 = vld [vmem:[%s1005 + $0x10] sm:$0xff]
    %v1009 = vld [vmem:[%s1005 + $0x18] sm:$0xff]
    %v1011 = vsel %vm645, %v1004, 0
    %1013 = vmatprep.subr.mxu0 0.0
    %1014 = vmatpush1.msra.mxu0 0.0
    %1015 = vmatprep.subr.mxu0 0.0
    %1016 = vmatpush1.msra.mxu0 0.0
    %1017 = vmatprep.subr.mxu0 0.0
    %1018 = vmatpush1.msra.mxu0 0.0
    %1019 = vmatprep.subr.mxu0 0.0
    %1020 = vmatpush1.msra.mxu0 0.0
    %1021 = vmatprep.subr.mxu0 0.0
    %1022 = vmatpush1.msra.mxu0 0.0
    %1023 = vmatprep.subr.mxu0 0.0
    %1024 = vmatpush1.msra.mxu0 0.0
    %1025 = vmatprep.subr.mxu0 0.0
    %1026 = vmatpush1.msra.mxu0 0.0
    %1027 = vmatprep.subr.mxu0 0.0
    %1028 = vmatpush1.msra.mxu0 0.0
    %1029 = vmatprep.subr.mxu0 0.0
    %1030 = vmatpush1.msra.mxu0 0.0
    %1031 = vmatprep.subr.mxu0 0.0
    %1032 = vmatpush1.msra.mxu0 0.0
    %1033 = vmatprep.subr.mxu0 0.0
    %1034 = vmatpush1.msra.mxu0 0.0
    %1035 = vmatprep.subr.mxu0 0.0
    %1036 = vmatpush1.msra.mxu0 0.0
    %1037 = vmatprep.subr.mxu0 0.0
    %1038 = vmatpush1.msra.mxu0 %v1009
    %1039 = vmatprep.subr.mxu0 0.0
    %1040 = vmatpush1.msra.mxu0 %v1008
    %1041 = vmatprep.subr.mxu0 0.0
    %1042 = vmatpush1.msra.mxu0 %v1007
    %1043 = vmatprep.subr.mxu0 0.0
    %1044 = vmatpush1.msra.mxu0 %v1006
    %1045 = vmatprep.subr.mxu0 0.0
    %1046 = vmatpush2.msra.mxu0 0.0
    %1047 = vmatprep.subr.mxu0 0.0
    %1048 = vmatpush2.msra.mxu0 0.0
    %1049 = vmatprep.subr.mxu0 0.0
    %1050 = vmatpush2.msra.mxu0 0.0
    %1051 = vmatprep.subr.mxu0 0.0
    %1052 = vmatpush2.msra.mxu0 0.0
    %1053 = vmatprep.subr.mxu0 0.0
    %1054 = vmatpush2.msra.mxu0 0.0
    %1055 = vmatprep.subr.mxu0 0.0
    %1056 = vmatpush2.msra.mxu0 0.0
    %1057 = vmatprep.subr.mxu0 0.0
    %1058 = vmatpush2.msra.mxu0 0.0
    %1059 = vmatprep.subr.mxu0 0.0
    %1060 = vmatpush2.msra.mxu0 0.0
    %1061 = vmatprep.subr.mxu0 0.0
    %1062 = vmatpush2.msra.mxu0 0.0
    %1063 = vmatprep.subr.mxu0 0.0
    %1064 = vmatpush2.msra.mxu0 0.0
    %1065 = vmatprep.subr.mxu0 0.0
    %1066 = vmatpush2.msra.mxu0 0.0
    %1067 = vmatprep.subr.mxu0 0.0
    %1068 = vmatpush2.msra.mxu0 0.0
    %1069 = vmatprep.subr.mxu0 0.0
    %1070 = vmatpush2.msra.mxu0 0.0
    %1071 = vmatprep.subr.mxu0 0.0
    %1072 = vmatpush2.msra.mxu0 0.0
    %1073 = vmatprep.subr.mxu0 0.0
    %1074 = vmatpush2.msra.mxu0 0.0
    %1075 = vmatprep.subr.mxu0 0.0
    %1076 = vmatpush2.msra.mxu0 0.0
    %1077 = vmatprep.mubr.f32.mxu0 0.0
    %1078 = vmatmul.mubr.f32.gmra.mxu0 %v1011
    %v1079 = vpop.f32.mrf.mxu0
    %v1080 = vadd.f32 0.0, %v1079
    %v1081 = vpop.f32.mrf.mxu0
    %1082 = vdwg.mxu0
    %v1083 = vld [vmem:[%s4 + $0x5] sm:$0x1]
    %v1084 = vlaneseq
    %v1085 = vshrl.u32 %v1084, 7
    %v1086 = vsub.s32 0, %v1085
    %v1087 = vrot.slane %v1083, %v1086
    %v1088 = vmul.f32 %v1080, %v1087
    %v1089 = vld [vmem:[%s5 + $0x5] sm:$0x1]
    %v1090 = vlaneseq
    %v1091 = vshrl.u32 %v1090, 7
    %v1092 = vsub.s32 0, %v1091
    %v1093 = vrot.slane %v1089, %v1092
    %v1094 = vadd.f32 %v1088, %v1093
    %v1095 = vmax.f32 %v1094, 0.0
    %s1096 = scalar_lea.vmem [#allocation3], 160
    %v1097 = vld [vmem:[%s1096] sm:$0xff]
    %v1098 = vld [vmem:[%s1096 + $0x8] sm:$0xff]
    %v1099 = vld [vmem:[%s1096 + $0x10] sm:$0xff]
    %v1100 = vld [vmem:[%s1096 + $0x18] sm:$0xff]
    %v1102 = vsel %vm645, %v1095, 0
    %1104 = vmatprep.subr.mxu0 0.0
    %1105 = vmatpush1.msra.mxu0 0.0
    %1106 = vmatprep.subr.mxu0 0.0
    %1107 = vmatpush1.msra.mxu0 0.0
    %1108 = vmatprep.subr.mxu0 0.0
    %1109 = vmatpush1.msra.mxu0 0.0
    %1110 = vmatprep.subr.mxu0 0.0
    %1111 = vmatpush1.msra.mxu0 0.0
    %1112 = vmatprep.subr.mxu0 0.0
    %1113 = vmatpush1.msra.mxu0 0.0
    %1114 = vmatprep.subr.mxu0 0.0
    %1115 = vmatpush1.msra.mxu0 0.0
    %1116 = vmatprep.subr.mxu0 0.0
    %1117 = vmatpush1.msra.mxu0 0.0
    %1118 = vmatprep.subr.mxu0 0.0
    %1119 = vmatpush1.msra.mxu0 0.0
    %1120 = vmatprep.subr.mxu0 0.0
    %1121 = vmatpush1.msra.mxu0 0.0
    %1122 = vmatprep.subr.mxu0 0.0
    %1123 = vmatpush1.msra.mxu0 0.0
    %1124 = vmatprep.subr.mxu0 0.0
    %1125 = vmatpush1.msra.mxu0 0.0
    %1126 = vmatprep.subr.mxu0 0.0
    %1127 = vmatpush1.msra.mxu0 0.0
    %1128 = vmatprep.subr.mxu0 0.0
    %1129 = vmatpush1.msra.mxu0 %v1100
    %1130 = vmatprep.subr.mxu0 0.0
    %1131 = vmatpush1.msra.mxu0 %v1099
    %1132 = vmatprep.subr.mxu0 0.0
    %1133 = vmatpush1.msra.mxu0 %v1098
    %1134 = vmatprep.subr.mxu0 0.0
    %1135 = vmatpush1.msra.mxu0 %v1097
    %1136 = vmatprep.subr.mxu0 0.0
    %1137 = vmatpush2.msra.mxu0 0.0
    %1138 = vmatprep.subr.mxu0 0.0
    %1139 = vmatpush2.msra.mxu0 0.0
    %1140 = vmatprep.subr.mxu0 0.0
    %1141 = vmatpush2.msra.mxu0 0.0
    %1142 = vmatprep.subr.mxu0 0.0
    %1143 = vmatpush2.msra.mxu0 0.0
    %1144 = vmatprep.subr.mxu0 0.0
    %1145 = vmatpush2.msra.mxu0 0.0
    %1146 = vmatprep.subr.mxu0 0.0
    %1147 = vmatpush2.msra.mxu0 0.0
    %1148 = vmatprep.subr.mxu0 0.0
    %1149 = vmatpush2.msra.mxu0 0.0
    %1150 = vmatprep.subr.mxu0 0.0
    %1151 = vmatpush2.msra.mxu0 0.0
    %1152 = vmatprep.subr.mxu0 0.0
    %1153 = vmatpush2.msra.mxu0 0.0
    %1154 = vmatprep.subr.mxu0 0.0
    %1155 = vmatpush2.msra.mxu0 0.0
    %1156 = vmatprep.subr.mxu0 0.0
    %1157 = vmatpush2.msra.mxu0 0.0
    %1158 = vmatprep.subr.mxu0 0.0
    %1159 = vmatpush2.msra.mxu0 0.0
    %1160 = vmatprep.subr.mxu0 0.0
    %1161 = vmatpush2.msra.mxu0 0.0
    %1162 = vmatprep.subr.mxu0 0.0
    %1163 = vmatpush2.msra.mxu0 0.0
    %1164 = vmatprep.subr.mxu0 0.0
    %1165 = vmatpush2.msra.mxu0 0.0
    %1166 = vmatprep.subr.mxu0 0.0
    %1167 = vmatpush2.msra.mxu0 0.0
    %1168 = vmatprep.mubr.f32.mxu0 0.0
    %1169 = vmatmul.mubr.f32.gmra.mxu0 %v1102
    %v1170 = vpop.f32.mrf.mxu0
    %v1171 = vadd.f32 %v898, %v1170
    %v1172 = vpop.f32.mrf.mxu0
    %1173 = vdwg.mxu0
    %v1174 = vld [vmem:[%s4 + $0x6] sm:$0x1]
    %v1175 = vlaneseq
    %v1176 = vshrl.u32 %v1175, 7
    %v1177 = vsub.s32 0, %v1176
    %v1178 = vrot.slane %v1174, %v1177
    %v1179 = vmul.f32 %v1171, %v1178
    %v1180 = vld [vmem:[%s5 + $0x6] sm:$0x1]
    %v1181 = vlaneseq
    %v1182 = vshrl.u32 %v1181, 7
    %v1183 = vsub.s32 0, %v1182
    %v1184 = vrot.slane %v1180, %v1183
    %v1185 = vadd.f32 %v1179, %v1184
    %v1186 = vmax.f32 %v1185, 0.0
    %s1187 = scalar_lea.vmem [#allocation3], 192
    %v1188 = vld [vmem:[%s1187] sm:$0xff]
    %v1189 = vld [vmem:[%s1187 + $0x8] sm:$0xff]
    %v1190 = vld [vmem:[%s1187 + $0x10] sm:$0xff]
    %v1191 = vld [vmem:[%s1187 + $0x18] sm:$0xff]
    %v1193 = vsel %vm645, %v1186, 0
    %1195 = vmatprep.subr.mxu0 0.0
    %1196 = vmatpush1.msra.mxu0 0.0
    %1197 = vmatprep.subr.mxu0 0.0
    %1198 = vmatpush1.msra.mxu0 0.0
    %1199 = vmatprep.subr.mxu0 0.0
    %1200 = vmatpush1.msra.mxu0 0.0
    %1201 = vmatprep.subr.mxu0 0.0
    %1202 = vmatpush1.msra.mxu0 0.0
    %1203 = vmatprep.subr.mxu0 0.0
    %1204 = vmatpush1.msra.mxu0 0.0
    %1205 = vmatprep.subr.mxu0 0.0
    %1206 = vmatpush1.msra.mxu0 0.0
    %1207 = vmatprep.subr.mxu0 0.0
    %1208 = vmatpush1.msra.mxu0 0.0
    %1209 = vmatprep.subr.mxu0 0.0
    %1210 = vmatpush1.msra.mxu0 0.0
    %1211 = vmatprep.subr.mxu0 0.0
    %1212 = vmatpush1.msra.mxu0 0.0
    %1213 = vmatprep.subr.mxu0 0.0
    %1214 = vmatpush1.msra.mxu0 0.0
    %1215 = vmatprep.subr.mxu0 0.0
    %1216 = vmatpush1.msra.mxu0 0.0
    %1217 = vmatprep.subr.mxu0 0.0
    %1218 = vmatpush1.msra.mxu0 0.0
    %1219 = vmatprep.subr.mxu0 0.0
    %1220 = vmatpush1.msra.mxu0 %v1191
    %1221 = vmatprep.subr.mxu0 0.0
    %1222 = vmatpush1.msra.mxu0 %v1190
    %1223 = vmatprep.subr.mxu0 0.0
    %1224 = vmatpush1.msra.mxu0 %v1189
    %1225 = vmatprep.subr.mxu0 0.0
    %1226 = vmatpush1.msra.mxu0 %v1188
    %1227 = vmatprep.subr.mxu0 0.0
    %1228 = vmatpush2.msra.mxu0 0.0
    %1229 = vmatprep.subr.mxu0 0.0
    %1230 = vmatpush2.msra.mxu0 0.0
    %1231 = vmatprep.subr.mxu0 0.0
    %1232 = vmatpush2.msra.mxu0 0.0
    %1233 = vmatprep.subr.mxu0 0.0
    %1234 = vmatpush2.msra.mxu0 0.0
    %1235 = vmatprep.subr.mxu0 0.0
    %1236 = vmatpush2.msra.mxu0 0.0
    %1237 = vmatprep.subr.mxu0 0.0
    %1238 = vmatpush2.msra.mxu0 0.0
    %1239 = vmatprep.subr.mxu0 0.0
    %1240 = vmatpush2.msra.mxu0 0.0
    %1241 = vmatprep.subr.mxu0 0.0
    %1242 = vmatpush2.msra.mxu0 0.0
    %1243 = vmatprep.subr.mxu0 0.0
    %1244 = vmatpush2.msra.mxu0 0.0
    %1245 = vmatprep.subr.mxu0 0.0
    %1246 = vmatpush2.msra.mxu0 0.0
    %1247 = vmatprep.subr.mxu0 0.0
    %1248 = vmatpush2.msra.mxu0 0.0
    %1249 = vmatprep.subr.mxu0 0.0
    %1250 = vmatpush2.msra.mxu0 0.0
    %1251 = vmatprep.subr.mxu0 0.0
    %1252 = vmatpush2.msra.mxu0 0.0
    %1253 = vmatprep.subr.mxu0 0.0
    %1254 = vmatpush2.msra.mxu0 0.0
    %1255 = vmatprep.subr.mxu0 0.0
    %1256 = vmatpush2.msra.mxu0 0.0
    %1257 = vmatprep.subr.mxu0 0.0
    %1258 = vmatpush2.msra.mxu0 0.0
    %1259 = vmatprep.mubr.f32.mxu0 0.0
    %1260 = vmatmul.mubr.f32.gmra.mxu0 %v1193
    %v1261 = vpop.f32.mrf.mxu0
    %v1262 = vadd.f32 0.0, %v1261
    %v1263 = vpop.f32.mrf.mxu0
    %1264 = vdwg.mxu0
    %v1265 = vld [vmem:[%s4 + $0x7] sm:$0x1]
    %v1266 = vlaneseq
    %v1267 = vshrl.u32 %v1266, 7
    %v1268 = vsub.s32 0, %v1267
    %v1269 = vrot.slane %v1265, %v1268
    %v1270 = vmul.f32 %v1262, %v1269
    %v1271 = vld [vmem:[%s5 + $0x7] sm:$0x1]
    %v1272 = vlaneseq
    %v1273 = vshrl.u32 %v1272, 7
    %v1274 = vsub.s32 0, %v1273
    %v1275 = vrot.slane %v1271, %v1274
    %v1276 = vadd.f32 %v1270, %v1275
    %v1277 = vmax.f32 %v1276, 0.0
    %s1278 = scalar_lea.vmem [#allocation3], 224
    %v1279 = vld [vmem:[%s1278] sm:$0xff]
    %v1280 = vld [vmem:[%s1278 + $0x8] sm:$0xff]
    %v1281 = vld [vmem:[%s1278 + $0x10] sm:$0xff]
    %v1282 = vld [vmem:[%s1278 + $0x18] sm:$0xff]
    %v1284 = vsel %vm645, %v1277, 0
    %1286 = vmatprep.subr.mxu0 0.0
    %1287 = vmatpush1.msra.mxu0 0.0
    %1288 = vmatprep.subr.mxu0 0.0
    %1289 = vmatpush1.msra.mxu0 0.0
    %1290 = vmatprep.subr.mxu0 0.0
    %1291 = vmatpush1.msra.mxu0 0.0
    %1292 = vmatprep.subr.mxu0 0.0
    %1293 = vmatpush1.msra.mxu0 0.0
    %1294 = vmatprep.subr.mxu0 0.0
    %1295 = vmatpush1.msra.mxu0 0.0
    %1296 = vmatprep.subr.mxu0 0.0
    %1297 = vmatpush1.msra.mxu0 0.0
    %1298 = vmatprep.subr.mxu0 0.0
    %1299 = vmatpush1.msra.mxu0 0.0
    %1300 = vmatprep.subr.mxu0 0.0
    %1301 = vmatpush1.msra.mxu0 0.0
    %1302 = vmatprep.subr.mxu0 0.0
    %1303 = vmatpush1.msra.mxu0 0.0
    %1304 = vmatprep.subr.mxu0 0.0
    %1305 = vmatpush1.msra.mxu0 0.0
    %1306 = vmatprep.subr.mxu0 0.0
    %1307 = vmatpush1.msra.mxu0 0.0
    %1308 = vmatprep.subr.mxu0 0.0
    %1309 = vmatpush1.msra.mxu0 0.0
    %1310 = vmatprep.subr.mxu0 0.0
    %1311 = vmatpush1.msra.mxu0 %v1282
    %1312 = vmatprep.subr.mxu0 0.0
    %1313 = vmatpush1.msra.mxu0 %v1281
    %1314 = vmatprep.subr.mxu0 0.0
    %1315 = vmatpush1.msra.mxu0 %v1280
    %1316 = vmatprep.subr.mxu0 0.0
    %1317 = vmatpush1.msra.mxu0 %v1279
    %1318 = vmatprep.subr.mxu0 0.0
    %1319 = vmatpush2.msra.mxu0 0.0
    %1320 = vmatprep.subr.mxu0 0.0
    %1321 = vmatpush2.msra.mxu0 0.0
    %1322 = vmatprep.subr.mxu0 0.0
    %1323 = vmatpush2.msra.mxu0 0.0
    %1324 = vmatprep.subr.mxu0 0.0
    %1325 = vmatpush2.msra.mxu0 0.0
    %1326 = vmatprep.subr.mxu0 0.0
    %1327 = vmatpush2.msra.mxu0 0.0
    %1328 = vmatprep.subr.mxu0 0.0
    %1329 = vmatpush2.msra.mxu0 0.0
    %1330 = vmatprep.subr.mxu0 0.0
    %1331 = vmatpush2.msra.mxu0 0.0
    %1332 = vmatprep.subr.mxu0 0.0
    %1333 = vmatpush2.msra.mxu0 0.0
    %1334 = vmatprep.subr.mxu0 0.0
    %1335 = vmatpush2.msra.mxu0 0.0
    %1336 = vmatprep.subr.mxu0 0.0
    %1337 = vmatpush2.msra.mxu0 0.0
    %1338 = vmatprep.subr.mxu0 0.0
    %1339 = vmatpush2.msra.mxu0 0.0
    %1340 = vmatprep.subr.mxu0 0.0
    %1341 = vmatpush2.msra.mxu0 0.0
    %1342 = vmatprep.subr.mxu0 0.0
    %1343 = vmatpush2.msra.mxu0 0.0
    %1344 = vmatprep.subr.mxu0 0.0
    %1345 = vmatpush2.msra.mxu0 0.0
    %1346 = vmatprep.subr.mxu0 0.0
    %1347 = vmatpush2.msra.mxu0 0.0
    %1348 = vmatprep.subr.mxu0 0.0
    %1349 = vmatpush2.msra.mxu0 0.0
    %1350 = vmatprep.mubr.f32.mxu0 0.0
    %1351 = vmatmul.mubr.f32.gmra.mxu0 %v1284
    %v1352 = vpop.f32.mrf.mxu0
    %v1353 = vadd.f32 0.0, %v1352
    %v1354 = vpop.f32.mrf.mxu0
    %1355 = vdwg.mxu0
    %v1356 = vld [vmem:[%s4 + $0x8] sm:$0x1]
    %v1357 = vlaneseq
    %v1358 = vshrl.u32 %v1357, 7
    %v1359 = vsub.s32 0, %v1358
    %v1360 = vrot.slane %v1356, %v1359
    %v1361 = vmul.f32 %v1353, %v1360
    %v1362 = vld [vmem:[%s5 + $0x8] sm:$0x1]
    %v1363 = vlaneseq
    %v1364 = vshrl.u32 %v1363, 7
    %v1365 = vsub.s32 0, %v1364
    %v1366 = vrot.slane %v1362, %v1365
    %v1367 = vadd.f32 %v1361, %v1366
    %v1368 = vmax.f32 %v1367, 0.0
    %s1369 = scalar_lea.vmem [#allocation3], 256
    %v1370 = vld [vmem:[%s1369] sm:$0xff]
    %v1371 = vld [vmem:[%s1369 + $0x8] sm:$0xff]
    %v1372 = vld [vmem:[%s1369 + $0x10] sm:$0xff]
    %v1373 = vld [vmem:[%s1369 + $0x18] sm:$0xff]
    %v1375 = vsel %vm645, %v1368, 0
    %1377 = vmatprep.subr.mxu0 0.0
    %1378 = vmatpush1.msra.mxu0 0.0
    %1379 = vmatprep.subr.mxu0 0.0
    %1380 = vmatpush1.msra.mxu0 0.0
    %1381 = vmatprep.subr.mxu0 0.0
    %1382 = vmatpush1.msra.mxu0 0.0
    %1383 = vmatprep.subr.mxu0 0.0
    %1384 = vmatpush1.msra.mxu0 0.0
    %1385 = vmatprep.subr.mxu0 0.0
    %1386 = vmatpush1.msra.mxu0 0.0
    %1387 = vmatprep.subr.mxu0 0.0
    %1388 = vmatpush1.msra.mxu0 0.0
    %1389 = vmatprep.subr.mxu0 0.0
    %1390 = vmatpush1.msra.mxu0 0.0
    %1391 = vmatprep.subr.mxu0 0.0
    %1392 = vmatpush1.msra.mxu0 0.0
    %1393 = vmatprep.subr.mxu0 0.0
    %1394 = vmatpush1.msra.mxu0 0.0
    %1395 = vmatprep.subr.mxu0 0.0
    %1396 = vmatpush1.msra.mxu0 0.0
    %1397 = vmatprep.subr.mxu0 0.0
    %1398 = vmatpush1.msra.mxu0 0.0
    %1399 = vmatprep.subr.mxu0 0.0
    %1400 = vmatpush1.msra.mxu0 0.0
    %1401 = vmatprep.subr.mxu0 0.0
    %1402 = vmatpush1.msra.mxu0 %v1373
    %1403 = vmatprep.subr.mxu0 0.0
    %1404 = vmatpush1.msra.mxu0 %v1372
    %1405 = vmatprep.subr.mxu0 0.0
    %1406 = vmatpush1.msra.mxu0 %v1371
    %1407 = vmatprep.subr.mxu0 0.0
    %1408 = vmatpush1.msra.mxu0 %v1370
    %1409 = vmatprep.subr.mxu0 0.0
    %1410 = vmatpush2.msra.mxu0 0.0
    %1411 = vmatprep.subr.mxu0 0.0
    %1412 = vmatpush2.msra.mxu0 0.0
    %1413 = vmatprep.subr.mxu0 0.0
    %1414 = vmatpush2.msra.mxu0 0.0
    %1415 = vmatprep.subr.mxu0 0.0
    %1416 = vmatpush2.msra.mxu0 0.0
    %1417 = vmatprep.subr.mxu0 0.0
    %1418 = vmatpush2.msra.mxu0 0.0
    %1419 = vmatprep.subr.mxu0 0.0
    %1420 = vmatpush2.msra.mxu0 0.0
    %1421 = vmatprep.subr.mxu0 0.0
    %1422 = vmatpush2.msra.mxu0 0.0
    %1423 = vmatprep.subr.mxu0 0.0
    %1424 = vmatpush2.msra.mxu0 0.0
    %1425 = vmatprep.subr.mxu0 0.0
    %1426 = vmatpush2.msra.mxu0 0.0
    %1427 = vmatprep.subr.mxu0 0.0
    %1428 = vmatpush2.msra.mxu0 0.0
    %1429 = vmatprep.subr.mxu0 0.0
    %1430 = vmatpush2.msra.mxu0 0.0
    %1431 = vmatprep.subr.mxu0 0.0
    %1432 = vmatpush2.msra.mxu0 0.0
    %1433 = vmatprep.subr.mxu0 0.0
    %1434 = vmatpush2.msra.mxu0 0.0
    %1435 = vmatprep.subr.mxu0 0.0
    %1436 = vmatpush2.msra.mxu0 0.0
    %1437 = vmatprep.subr.mxu0 0.0
    %1438 = vmatpush2.msra.mxu0 0.0
    %1439 = vmatprep.subr.mxu0 0.0
    %1440 = vmatpush2.msra.mxu0 0.0
    %1441 = vmatprep.mubr.f32.mxu0 0.0
    %1442 = vmatmul.mubr.f32.gmra.mxu0 %v1375
    %v1443 = vpop.f32.mrf.mxu0
    %v1444 = vadd.f32 %v1171, %v1443
    %v1445 = vpop.f32.mrf.mxu0
    %1446 = vdwg.mxu0
    %v1447 = vld [vmem:[%s4 + $0x9] sm:$0x1]
    %v1448 = vlaneseq
    %v1449 = vshrl.u32 %v1448, 7
    %v1450 = vsub.s32 0, %v1449
    %v1451 = vrot.slane %v1447, %v1450
    %v1452 = vmul.f32 %v1444, %v1451
    %v1453 = vld [vmem:[%s5 + $0x9] sm:$0x1]
    %v1454 = vlaneseq
    %v1455 = vshrl.u32 %v1454, 7
    %v1456 = vsub.s32 0, %v1455
    %v1457 = vrot.slane %v1453, %v1456
    %v1458 = vadd.f32 %v1452, %v1457
    %v1459 = vmax.f32 %v1458, 0.0
    %s1460 = scalar_lea.vmem [#allocation3], 288
    %v1461 = vld [vmem:[%s1460] sm:$0xff]
    %v1462 = vld [vmem:[%s1460 + $0x8] sm:$0xff]
    %v1463 = vld [vmem:[%s1460 + $0x10] sm:$0xff]
    %v1464 = vld [vmem:[%s1460 + $0x18] sm:$0xff]
    %v1466 = vsel %vm645, %v1459, 0
    %1468 = vmatprep.subr.mxu0 0.0
    %1469 = vmatpush1.msra.mxu0 0.0
    %1470 = vmatprep.subr.mxu0 0.0
    %1471 = vmatpush1.msra.mxu0 0.0
    %1472 = vmatprep.subr.mxu0 0.0
    %1473 = vmatpush1.msra.mxu0 0.0
    %1474 = vmatprep.subr.mxu0 0.0
    %1475 = vmatpush1.msra.mxu0 0.0
    %1476 = vmatprep.subr.mxu0 0.0
    %1477 = vmatpush1.msra.mxu0 0.0
    %1478 = vmatprep.subr.mxu0 0.0
    %1479 = vmatpush1.msra.mxu0 0.0
    %1480 = vmatprep.subr.mxu0 0.0
    %1481 = vmatpush1.msra.mxu0 0.0
    %1482 = vmatprep.subr.mxu0 0.0
    %1483 = vmatpush1.msra.mxu0 0.0
    %1484 = vmatprep.subr.mxu0 0.0
    %1485 = vmatpush1.msra.mxu0 0.0
    %1486 = vmatprep.subr.mxu0 0.0
    %1487 = vmatpush1.msra.mxu0 0.0
    %1488 = vmatprep.subr.mxu0 0.0
    %1489 = vmatpush1.msra.mxu0 0.0
    %1490 = vmatprep.subr.mxu0 0.0
    %1491 = vmatpush1.msra.mxu0 0.0
    %1492 = vmatprep.subr.mxu0 0.0
    %1493 = vmatpush1.msra.mxu0 %v1464
    %1494 = vmatprep.subr.mxu0 0.0
    %1495 = vmatpush1.msra.mxu0 %v1463
    %1496 = vmatprep.subr.mxu0 0.0
    %1497 = vmatpush1.msra.mxu0 %v1462
    %1498 = vmatprep.subr.mxu0 0.0
    %1499 = vmatpush1.msra.mxu0 %v1461
    %1500 = vmatprep.subr.mxu0 0.0
    %1501 = vmatpush2.msra.mxu0 0.0
    %1502 = vmatprep.subr.mxu0 0.0
    %1503 = vmatpush2.msra.mxu0 0.0
    %1504 = vmatprep.subr.mxu0 0.0
    %1505 = vmatpush2.msra.mxu0 0.0
    %1506 = vmatprep.subr.mxu0 0.0
    %1507 = vmatpush2.msra.mxu0 0.0
    %1508 = vmatprep.subr.mxu0 0.0
    %1509 = vmatpush2.msra.mxu0 0.0
    %1510 = vmatprep.subr.mxu0 0.0
    %1511 = vmatpush2.msra.mxu0 0.0
    %1512 = vmatprep.subr.mxu0 0.0
    %1513 = vmatpush2.msra.mxu0 0.0
    %1514 = vmatprep.subr.mxu0 0.0
    %1515 = vmatpush2.msra.mxu0 0.0
    %1516 = vmatprep.subr.mxu0 0.0
    %1517 = vmatpush2.msra.mxu0 0.0
    %1518 = vmatprep.subr.mxu0 0.0
    %1519 = vmatpush2.msra.mxu0 0.0
    %1520 = vmatprep.subr.mxu0 0.0
    %1521 = vmatpush2.msra.mxu0 0.0
    %1522 = vmatprep.subr.mxu0 0.0
    %1523 = vmatpush2.msra.mxu0 0.0
    %1524 = vmatprep.subr.mxu0 0.0
    %1525 = vmatpush2.msra.mxu0 0.0
    %1526 = vmatprep.subr.mxu0 0.0
    %1527 = vmatpush2.msra.mxu0 0.0
    %1528 = vmatprep.subr.mxu0 0.0
    %1529 = vmatpush2.msra.mxu0 0.0
    %1530 = vmatprep.subr.mxu0 0.0
    %1531 = vmatpush2.msra.mxu0 0.0
    %1532 = vmatprep.mubr.f32.mxu0 0.0
    %1533 = vmatmul.mubr.f32.gmra.mxu0 %v1466
    %v1534 = vpop.f32.mrf.mxu0
    %v1535 = vadd.f32 0.0, %v1534
    %v1536 = vpop.f32.mrf.mxu0
    %1537 = vdwg.mxu0
    %v1538 = vld [vmem:[%s4 + $0xa] sm:$0x1]
    %v1539 = vlaneseq
    %v1540 = vshrl.u32 %v1539, 7
    %v1541 = vsub.s32 0, %v1540
    %v1542 = vrot.slane %v1538, %v1541
    %v1543 = vmul.f32 %v1535, %v1542
    %v1544 = vld [vmem:[%s5 + $0xa] sm:$0x1]
    %v1545 = vlaneseq
    %v1546 = vshrl.u32 %v1545, 7
    %v1547 = vsub.s32 0, %v1546
    %v1548 = vrot.slane %v1544, %v1547
    %v1549 = vadd.f32 %v1543, %v1548
    %v1550 = vmax.f32 %v1549, 0.0
    %s1551 = scalar_lea.vmem [#allocation3], 320
    %v1552 = vld [vmem:[%s1551] sm:$0xff]
    %v1553 = vld [vmem:[%s1551 + $0x8] sm:$0xff]
    %v1554 = vld [vmem:[%s1551 + $0x10] sm:$0xff]
    %v1555 = vld [vmem:[%s1551 + $0x18] sm:$0xff]
    %v1557 = vsel %vm645, %v1550, 0
    %1559 = vmatprep.subr.mxu0 0.0
    %1560 = vmatpush1.msra.mxu0 0.0
    %1561 = vmatprep.subr.mxu0 0.0
    %1562 = vmatpush1.msra.mxu0 0.0
    %1563 = vmatprep.subr.mxu0 0.0
    %1564 = vmatpush1.msra.mxu0 0.0
    %1565 = vmatprep.subr.mxu0 0.0
    %1566 = vmatpush1.msra.mxu0 0.0
    %1567 = vmatprep.subr.mxu0 0.0
    %1568 = vmatpush1.msra.mxu0 0.0
    %1569 = vmatprep.subr.mxu0 0.0
    %1570 = vmatpush1.msra.mxu0 0.0
    %1571 = vmatprep.subr.mxu0 0.0
    %1572 = vmatpush1.msra.mxu0 0.0
    %1573 = vmatprep.subr.mxu0 0.0
    %1574 = vmatpush1.msra.mxu0 0.0
    %1575 = vmatprep.subr.mxu0 0.0
    %1576 = vmatpush1.msra.mxu0 0.0
    %1577 = vmatprep.subr.mxu0 0.0
    %1578 = vmatpush1.msra.mxu0 0.0
    %1579 = vmatprep.subr.mxu0 0.0
    %1580 = vmatpush1.msra.mxu0 0.0
    %1581 = vmatprep.subr.mxu0 0.0
    %1582 = vmatpush1.msra.mxu0 0.0
    %1583 = vmatprep.subr.mxu0 0.0
    %1584 = vmatpush1.msra.mxu0 %v1555
    %1585 = vmatprep.subr.mxu0 0.0
    %1586 = vmatpush1.msra.mxu0 %v1554
    %1587 = vmatprep.subr.mxu0 0.0
    %1588 = vmatpush1.msra.mxu0 %v1553
    %1589 = vmatprep.subr.mxu0 0.0
    %1590 = vmatpush1.msra.mxu0 %v1552
    %1591 = vmatprep.subr.mxu0 0.0
    %1592 = vmatpush2.msra.mxu0 0.0
    %1593 = vmatprep.subr.mxu0 0.0
    %1594 = vmatpush2.msra.mxu0 0.0
    %1595 = vmatprep.subr.mxu0 0.0
    %1596 = vmatpush2.msra.mxu0 0.0
    %1597 = vmatprep.subr.mxu0 0.0
    %1598 = vmatpush2.msra.mxu0 0.0
    %1599 = vmatprep.subr.mxu0 0.0
    %1600 = vmatpush2.msra.mxu0 0.0
    %1601 = vmatprep.subr.mxu0 0.0
    %1602 = vmatpush2.msra.mxu0 0.0
    %1603 = vmatprep.subr.mxu0 0.0
    %1604 = vmatpush2.msra.mxu0 0.0
    %1605 = vmatprep.subr.mxu0 0.0
    %1606 = vmatpush2.msra.mxu0 0.0
    %1607 = vmatprep.subr.mxu0 0.0
    %1608 = vmatpush2.msra.mxu0 0.0
    %1609 = vmatprep.subr.mxu0 0.0
    %1610 = vmatpush2.msra.mxu0 0.0
    %1611 = vmatprep.subr.mxu0 0.0
    %1612 = vmatpush2.msra.mxu0 0.0
    %1613 = vmatprep.subr.mxu0 0.0
    %1614 = vmatpush2.msra.mxu0 0.0
    %1615 = vmatprep.subr.mxu0 0.0
    %1616 = vmatpush2.msra.mxu0 0.0
    %1617 = vmatprep.subr.mxu0 0.0
    %1618 = vmatpush2.msra.mxu0 0.0
    %1619 = vmatprep.subr.mxu0 0.0
    %1620 = vmatpush2.msra.mxu0 0.0
    %1621 = vmatprep.subr.mxu0 0.0
    %1622 = vmatpush2.msra.mxu0 0.0
    %1623 = vmatprep.mubr.f32.mxu0 0.0
    %1624 = vmatmul.mubr.f32.gmra.mxu0 %v1557
    %v1625 = vpop.f32.mrf.mxu0
    %v1626 = vadd.f32 0.0, %v1625
    %v1627 = vpop.f32.mrf.mxu0
    %1628 = vdwg.mxu0
    %v1629 = vld [vmem:[%s4 + $0xb] sm:$0x1]
    %v1630 = vlaneseq
    %v1631 = vshrl.u32 %v1630, 7
    %v1632 = vsub.s32 0, %v1631
    %v1633 = vrot.slane %v1629, %v1632
    %v1634 = vmul.f32 %v1626, %v1633
    %v1635 = vld [vmem:[%s5 + $0xb] sm:$0x1]
    %v1636 = vlaneseq
    %v1637 = vshrl.u32 %v1636, 7
    %v1638 = vsub.s32 0, %v1637
    %v1639 = vrot.slane %v1635, %v1638
    %v1640 = vadd.f32 %v1634, %v1639
    %v1641 = vmax.f32 %v1640, 0.0
    %s1642 = scalar_lea.vmem [#allocation3], 352
    %v1643 = vld [vmem:[%s1642] sm:$0xff]
    %v1644 = vld [vmem:[%s1642 + $0x8] sm:$0xff]
    %v1645 = vld [vmem:[%s1642 + $0x10] sm:$0xff]
    %v1646 = vld [vmem:[%s1642 + $0x18] sm:$0xff]
    %v1648 = vsel %vm645, %v1641, 0
    %1650 = vmatprep.subr.mxu0 0.0
    %1651 = vmatpush1.msra.mxu0 0.0
    %1652 = vmatprep.subr.mxu0 0.0
    %1653 = vmatpush1.msra.mxu0 0.0
    %1654 = vmatprep.subr.mxu0 0.0
    %1655 = vmatpush1.msra.mxu0 0.0
    %1656 = vmatprep.subr.mxu0 0.0
    %1657 = vmatpush1.msra.mxu0 0.0
    %1658 = vmatprep.subr.mxu0 0.0
    %1659 = vmatpush1.msra.mxu0 0.0
    %1660 = vmatprep.subr.mxu0 0.0
    %1661 = vmatpush1.msra.mxu0 0.0
    %1662 = vmatprep.subr.mxu0 0.0
    %1663 = vmatpush1.msra.mxu0 0.0
    %1664 = vmatprep.subr.mxu0 0.0
    %1665 = vmatpush1.msra.mxu0 0.0
    %1666 = vmatprep.subr.mxu0 0.0
    %1667 = vmatpush1.msra.mxu0 0.0
    %1668 = vmatprep.subr.mxu0 0.0
    %1669 = vmatpush1.msra.mxu0 0.0
    %1670 = vmatprep.subr.mxu0 0.0
    %1671 = vmatpush1.msra.mxu0 0.0
    %1672 = vmatprep.subr.mxu0 0.0
    %1673 = vmatpush1.msra.mxu0 0.0
    %1674 = vmatprep.subr.mxu0 0.0
    %1675 = vmatpush1.msra.mxu0 %v1646
    %1676 = vmatprep.subr.mxu0 0.0
    %1677 = vmatpush1.msra.mxu0 %v1645
    %1678 = vmatprep.subr.mxu0 0.0
    %1679 = vmatpush1.msra.mxu0 %v1644
    %1680 = vmatprep.subr.mxu0 0.0
    %1681 = vmatpush1.msra.mxu0 %v1643
    %1682 = vmatprep.subr.mxu0 0.0
    %1683 = vmatpush2.msra.mxu0 0.0
    %1684 = vmatprep.subr.mxu0 0.0
    %1685 = vmatpush2.msra.mxu0 0.0
    %1686 = vmatprep.subr.mxu0 0.0
    %1687 = vmatpush2.msra.mxu0 0.0
    %1688 = vmatprep.subr.mxu0 0.0
    %1689 = vmatpush2.msra.mxu0 0.0
    %1690 = vmatprep.subr.mxu0 0.0
    %1691 = vmatpush2.msra.mxu0 0.0
    %1692 = vmatprep.subr.mxu0 0.0
    %1693 = vmatpush2.msra.mxu0 0.0
    %1694 = vmatprep.subr.mxu0 0.0
    %1695 = vmatpush2.msra.mxu0 0.0
    %1696 = vmatprep.subr.mxu0 0.0
    %1697 = vmatpush2.msra.mxu0 0.0
    %1698 = vmatprep.subr.mxu0 0.0
    %1699 = vmatpush2.msra.mxu0 0.0
    %1700 = vmatprep.subr.mxu0 0.0
    %1701 = vmatpush2.msra.mxu0 0.0
    %1702 = vmatprep.subr.mxu0 0.0
    %1703 = vmatpush2.msra.mxu0 0.0
    %1704 = vmatprep.subr.mxu0 0.0
    %1705 = vmatpush2.msra.mxu0 0.0
    %1706 = vmatprep.subr.mxu0 0.0
    %1707 = vmatpush2.msra.mxu0 0.0
    %1708 = vmatprep.subr.mxu0 0.0
    %1709 = vmatpush2.msra.mxu0 0.0
    %1710 = vmatprep.subr.mxu0 0.0
    %1711 = vmatpush2.msra.mxu0 0.0
    %1712 = vmatprep.subr.mxu0 0.0
    %1713 = vmatpush2.msra.mxu0 0.0
    %1714 = vmatprep.mubr.f32.mxu0 0.0
    %1715 = vmatmul.mubr.f32.gmra.mxu0 %v1648
    %v1716 = vpop.f32.mrf.mxu0
    %v1717 = vadd.f32 %v1444, %v1716
    %v1718 = vpop.f32.mrf.mxu0
    %1719 = vdwg.mxu0
    %v1720 = vld [vmem:[%s7] sm:$0x1]
    %v1722 = vlaneseq
    %v1723 = vshrl.u32 %v1722, 7
    %v1724 = vsub.s32 0, %v1723
    %v1725 = vrot.slane %v1720, %v1724
    %v1727 = vmul.f32 %v546, %v1725
    %vm1728 = vcmask 254976
    %v1729 = vsel %vm1728, %v1727, 0.0
    %1730 = vadd.xlane.f32.xlu0 %v1729
    %v1731 = vpop.xlane.xlu0 %1730
    %v1732 = vld [vmem:[%s8] sm:$0x1]
    %v1734 = vlaneseq
    %v1735 = vshrl.u32 %v1734, 7
    %v1736 = vsub.s32 0, %v1735
    %v1737 = vrot.slane %v1732, %v1736
    %v1739 = vmul.f32 %v1717, %v1737
    %v1740 = vsel %vm1728, %v1739, 0.0
    %1741 = vadd.xlane.f32.xlu0 %v1740
    %v1742 = vpop.xlane.xlu0 %1741
    %v1743 = vadd.f32 %v1731, %v1742
    %v1744 = vld [vmem:[#allocation2] sm:$0x1]
    %v1746 = vlaneseq
    %v1747 = vshrl.u32 %v1746, 7
    %v1748 = vsub.s32 0, %v1747
    %v1749 = vrot.slane %v1744, %v1748
    %v1751 = vadd.f32 %v1743, %v1749
    %vm1752 = vcmask 1024
    %1753 = vst.msk [vmem:[%s10] sm:$0x3] %vm1752, %v1751
    // Predicated region
    $region46: #{petfinder_forward.1} parent=1 // pred_check
      _
    $region47: #{petfinder_forward.1} parent=1 // pred_check_branch
      %1755 = sbr.rel (0) target = $region49
    $region48: #{petfinder_forward.1} parent=1 // pred_region
      _
    $region49: #{petfinder_forward.1} parent=1 // pred_fallthru
      _
    // Predicated region
    $region50: #{petfinder_forward.1} parent=1 // pred_check
      _
    $region51: #{petfinder_forward.1} parent=1 // pred_check_branch
      %1757 = sbr.rel (0) target = $region53
    $region52: #{petfinder_forward.1} parent=1 // pred_region
      %s1759 = ssub.s32 32, 32
      %1760 = vsyncadd [#allocation5], %s1759
      %s1762 = sshll.u32 [#allocation6], 4
      %s1763 = int_to_ptr.vmem [resolvable:$true] %s1762
      %1765 = dma.vmem_to_hbm [thread:$0]  %s1763, 32, %s11, [#allocation5]
    $region53: #{petfinder_forward.1} parent=1 // pred_fallthru
      _
    // Predicated region
    $region54: #{petfinder_forward.1} parent=1 // pred_check
      _
    $region55: #{petfinder_forward.1} parent=1 // pred_check_branch
      %1767 = sbr.rel (0) target = $region57
    $region56: #{petfinder_forward.1} parent=1 // pred_region
      _
    $region57: #{petfinder_forward.1} parent=1 // pred_fallthru
      _
    // Predicated region
    $region58: #{petfinder_forward.1} parent=1 // pred_check
      _
    $region59: #{petfinder_forward.1} parent=1 // pred_check_branch
      %1769 = sbr.rel (0) target = $region61
    $region60: #{petfinder_forward.1} parent=1 // pred_region
      %1770 = dma.done [#allocation5], 32
    $region61: #{petfinder_forward.1} parent=1 // pred_fallthru
      _
    %1771 = vsyncpa [#allocation4], 1
    %1772 = vsyncpa [#allocation5], 1

</llo_original>
